<compile_context>
chip_gen: v5e
topology: v5e:2x2
jax: 0.10.0
libtpu: 0.0.40
codegen_flags: <defaults>
</compile_context>

<pallas_src>
import functools
import numpy as np
import jax
import jax.numpy as jnp
from jax.experimental import pallas as pl
from jax.experimental.pallas import tpu as pltpu


def _round_up(x, m):
    return ((x + m - 1) // m) * m


# ------------------------- Pallas kernel: fused 2-layer LSTM -------------------------
def lstm2_kernel(x_ref, wih0_ref, whh0_ref, b0_ref, wih1_ref, whh1_ref, b1_ref,
                 out_ref, h_ref, c_ref, mid_ref):
    """Full T-step recurrence for both LSTM layers in one kernel invocation.

    x_ref    : (T, Bp, Dp)   padded time-major input (layer 0)
    wih*_ref : (Dp|Hp, 4*Hp) fused gate weights, gate-major columns [i|f|g|o]
    whh*_ref : (Hp, 4*Hp)
    b*_ref   : (1, 4*Hp)     combined bias (b_ih + b_hh), zero in padded lanes
    out_ref  : (T, Bp, Hp)   layer-1 hidden states (single writeback at the end)
    h_ref, c_ref : (Bp, Hp)  VMEM carries
    mid_ref  : (T, Bp, Hp)   VMEM buffer for layer-0 -> layer-1 activations
    """
    T = x_ref.shape[0]
    Hp = h_ref.shape[1]

    def cell(x_t, h_prev, c_prev, wih, whh, b):
        # One fused (B, 4*Hp) gate matmul pair instead of 8 tiny MXU pushes.
        gates = (jnp.dot(x_t, wih, preferred_element_type=jnp.float32)
                 + jnp.dot(h_prev, whh, preferred_element_type=jnp.float32)
                 + b)
        i_g = jax.nn.sigmoid(gates[:, 0 * Hp:1 * Hp])
        f_g = jax.nn.sigmoid(gates[:, 1 * Hp:2 * Hp])
        g_g = jnp.tanh(gates[:, 2 * Hp:3 * Hp])
        o_g = jax.nn.sigmoid(gates[:, 3 * Hp:4 * Hp])
        c_new = f_g * c_prev + i_g * g_g
        h_new = o_g * jnp.tanh(c_new)
        return h_new, c_new

    # Load invariant weights once (they live in VMEM for the whole kernel).
    wih0, whh0, b0 = wih0_ref[...], whh0_ref[...], b0_ref[...]
    wih1, whh1, b1 = wih1_ref[...], whh1_ref[...], b1_ref[...]

    # ---------------- layer 0 ----------------
    h_ref[...] = jnp.zeros_like(h_ref)
    c_ref[...] = jnp.zeros_like(c_ref)

    def body0(t, carry):
        h_new, c_new = cell(x_ref[t], h_ref[...], c_ref[...], wih0, whh0, b0)
        h_ref[...] = h_new
        c_ref[...] = c_new
        mid_ref[t] = h_new
        return carry

    jax.lax.fori_loop(0, T, body0, 0, unroll=True)

    # ---------------- layer 1 ----------------
    h_ref[...] = jnp.zeros_like(h_ref)
    c_ref[...] = jnp.zeros_like(c_ref)

    def body1(t, carry):
        h_new, c_new = cell(mid_ref[t], h_ref[...], c_ref[...], wih1, whh1, b1)
        h_ref[...] = h_new
        c_ref[...] = c_new
        out_ref[t] = h_new
        return carry

    jax.lax.fori_loop(0, T, body1, 0, unroll=True)


# ------------------------- Weight packing (done once, off the hot path) -------------------------
def pack_lstm_layer(w_ih, w_hh, b_ih, b_hh, hidden_size, in_pad, h_pad):
    """PyTorch (4H, D)/(4H, H)/(4H,) params -> fused, zero-padded MXU layout."""
    H = hidden_size
    D = w_ih.shape[1]
    wih_g = w_ih.astype(jnp.float32).reshape(4, H, D)      # gate order (i, f, g, o)
    whh_g = w_hh.astype(jnp.float32).reshape(4, H, H)
    b_g = (b_ih + b_hh).astype(jnp.float32).reshape(4, H)  # combined bias

    wih_p = jnp.zeros((4, h_pad, in_pad), jnp.float32).at[:, :H, :D].set(wih_g)
    whh_p = jnp.zeros((4, h_pad, h_pad), jnp.float32).at[:, :H, :H].set(whh_g)
    b_p = jnp.zeros((4, h_pad), jnp.float32).at[:, :H].set(b_g)

    wih_f = jnp.transpose(wih_p, (2, 0, 1)).reshape(in_pad, 4 * h_pad)  # (Dp, 4Hp)
    whh_f = jnp.transpose(whh_p, (2, 0, 1)).reshape(h_pad, 4 * h_pad)   # (Hp, 4Hp)
    b_f = b_p.reshape(1, 4 * h_pad)                                     # (1, 4Hp)
    return wih_f, whh_f, b_f


def pack_seq_lstm_params(params, input_size, hidden_size):
    assert len(params) == 2, "kernel fuses exactly the 2-layer stack of seqLstm"
    d_pad = _round_up(input_size, 32)
    h_pad = _round_up(hidden_size, 32)   # 4 * h_pad = 128 -> one vreg row of gates
    l0 = pack_lstm_layer(*params[0], hidden_size, d_pad, h_pad)
    l1 = pack_lstm_layer(*params[1], hidden_size, h_pad, h_pad)
    return (l0, l1), d_pad, h_pad


# ------------------------- seqLstm forward (fused 2-layer, single pallas_call) -------------------------
@functools.partial(jax.jit, static_argnames=("hidden_size", "d_pad", "h_pad"))
def seq_lstm_forward(x_btd, packed_params, *, hidden_size, d_pad, h_pad):
    """x_btd: (B, T, input_size) -> (B, T, hidden_size), matching seqLstm.forward."""
    (wih0, whh0, b0), (wih1, whh1, b1) = packed_params
    B, T, D = x_btd.shape
    b_pad = _round_up(B, 8)

    # time-major + zero-pad to whole sublane/lane tiles
    x_tbd = jnp.transpose(x_btd.astype(jnp.float32), (1, 0, 2))
    x_p = jnp.zeros((T, b_pad, d_pad), jnp.float32).at[:, :B, :D].set(x_tbd)

    out_p = pl.pallas_call(
        lstm2_kernel,
        out_shape=jax.ShapeDtypeStruct((T, b_pad, h_pad), jnp.float32),
        grid_spec=pltpu.PrefetchScalarGridSpec(
            num_scalar_prefetch=0,
            grid=(1,),  # whole recurrence in one invocation; no per-step grid overhead
            in_specs=[
                pl.BlockSpec((T, b_pad, d_pad), lambda i: (0, 0, 0)),
                pl.BlockSpec((d_pad, 4 * h_pad), lambda i: (0, 0)),
                pl.BlockSpec((h_pad, 4 * h_pad), lambda i: (0, 0)),
                pl.BlockSpec((1, 4 * h_pad), lambda i: (0, 0)),
                pl.BlockSpec((h_pad, 4 * h_pad), lambda i: (0, 0)),
                pl.BlockSpec((h_pad, 4 * h_pad), lambda i: (0, 0)),
                pl.BlockSpec((1, 4 * h_pad), lambda i: (0, 0)),
            ],
            out_specs=pl.BlockSpec((T, b_pad, h_pad), lambda i: (0, 0, 0)),
            scratch_shapes=[
                pltpu.VMEM((b_pad, h_pad), jnp.float32),      # h carry
                pltpu.VMEM((b_pad, h_pad), jnp.float32),      # c carry
                pltpu.VMEM((T, b_pad, h_pad), jnp.float32),   # layer-0 outputs
            ],
        ),
        compiler_params=pltpu.CompilerParams(
            dimension_semantics=("arbitrary",)),
    )(x_p, wih0, whh0, b0, wih1, whh1, b1)

    # Strip padding and return batch_first.
    return jnp.transpose(out_p[:, :B, :hidden_size], (1, 0, 2))


# ------------------------- Pure-JAX reference -------------------------
def seq_lstm_reference(x_btd, params, hidden_size):
    h_in = x_btd
    for (w_ih, w_hh, b_ih, b_hh) in params:
        B, T, _ = h_in.shape

        def step(carry, x_t):
            h, c = carry
            gates = x_t @ w_ih.T + h @ w_hh.T + b_ih + b_hh
            i, f, g, o = jnp.split(gates, 4, axis=-1)
            i, f, o = jax.nn.sigmoid(i), jax.nn.sigmoid(f), jax.nn.sigmoid(o)
            g = jnp.tanh(g)
            c = f * c + i * g
            h = o * jnp.tanh(c)
            return (h, c), h

        h0 = jnp.zeros((B, hidden_size), jnp.float32)
        c0 = jnp.zeros((B, hidden_size), jnp.float32)
        _, ys = jax.lax.scan(step, (h0, c0), jnp.swapaxes(h_in, 0, 1))
        h_in = jnp.swapaxes(ys, 0, 1)
    return h_in


# ------------------------- Deterministic parameter init -------------------------
def init_lstm_params(key, input_size, hidden_size, num_layers):
    params = []
    std = 1.0 / np.sqrt(hidden_size)
    for layer in range(num_layers):
        in_dim = input_size if layer == 0 else hidden_size
        key, k1, k2, k3, k4 = jax.random.split(key, 5)
        w_ih = jax.random.uniform(k1, (4 * hidden_size, in_dim),
                                  minval=-std, maxval=std, dtype=jnp.float32)
        w_hh = jax.random.uniform(k2, (4 * hidden_size, hidden_size),
                                  minval=-std, maxval=std, dtype=jnp.float32)
        b_ih = jax.random.uniform(k3, (4 * hidden_size,),
                                  minval=-std, maxval=std, dtype=jnp.float32)
        b_hh = jax.random.uniform(k4, (4 * hidden_size,),
                                  minval=-std, maxval=std, dtype=jnp.float32)
        params.append((w_ih, w_hh, b_ih, b_hh))
    return params


if __name__ == "__main__":
    INPUT_SIZE = 18
    HIDDEN_SIZE = 18
    NUM_LAYERS = 2
    BATCH = 2
    SEQ = 8

    root = jax.random.PRNGKey(0)
    k_params, k_x = jax.random.split(root)

    params = init_lstm_params(k_params, INPUT_SIZE, HIDDEN_SIZE, NUM_LAYERS)
    x = jax.random.normal(k_x, (BATCH, SEQ, INPUT_SIZE), dtype=jnp.float32)

    # Pack/pad weights once, outside the per-call path.
    packed, d_pad, h_pad = pack_seq_lstm_params(params, INPUT_SIZE, HIDDEN_SIZE)
    packed = jax.tree_util.tree_map(jax.block_until_ready, packed)

    out = seq_lstm_forward(x, packed, hidden_size=HIDDEN_SIZE,
                           d_pad=d_pad, h_pad=h_pad)
    out = jax.block_until_ready(out)

    ref = jax.block_until_ready(seq_lstm_reference(x, params, HIDDEN_SIZE))
    assert out.shape == (BATCH, SEQ, HIDDEN_SIZE), out.shape
    np.testing.assert_allclose(np.asarray(out), np.asarray(ref), atol=2e-3, rtol=2e-3)

    print("KERNEL_OK")
</pallas_src>

<mosaic_0001>
module attributes {stable_mosaic.version = 11 : i64} {
  func.func @lstm2_kernel(%arg0: i32, %arg1: memref<8x8x32xf32, #tpu.memory_space<vmem>>, %arg2: memref<32x128xf32, #tpu.memory_space<vmem>>, %arg3: memref<32x128xf32, #tpu.memory_space<vmem>>, %arg4: memref<1x128xf32, #tpu.memory_space<vmem>>, %arg5: memref<32x128xf32, #tpu.memory_space<vmem>>, %arg6: memref<32x128xf32, #tpu.memory_space<vmem>>, %arg7: memref<1x128xf32, #tpu.memory_space<vmem>>, %arg8: memref<8x8x32xf32, #tpu.memory_space<vmem>>, %arg9: memref<8x32xf32, #tpu.memory_space<vmem>>, %arg10: memref<8x32xf32, #tpu.memory_space<vmem>>, %arg11: memref<8x8x32xf32, #tpu.memory_space<vmem>>) attributes {dimension_semantics = [#tpu.dimension_semantics<arbitrary>], iteration_bounds = array<i64: 1>, scalar_prefetch = 0 : i64, scratch_operands = 3 : i64, tpu.core_type = #tpu.core_type<tc>, window_params = [{pipeline_mode = #tpu.pipeline_mode<synchronous>, transform_indices = @transform_0, window_bounds = array<i64: 8, 8, 32>}, {pipeline_mode = #tpu.pipeline_mode<synchronous>, transform_indices = @transform_1, window_bounds = array<i64: 32, 128>}, {pipeline_mode = #tpu.pipeline_mode<synchronous>, transform_indices = @transform_2, window_bounds = array<i64: 32, 128>}, {pipeline_mode = #tpu.pipeline_mode<synchronous>, transform_indices = @transform_3, window_bounds = array<i64: 1, 128>}, {pipeline_mode = #tpu.pipeline_mode<synchronous>, transform_indices = @transform_4, window_bounds = array<i64: 32, 128>}, {pipeline_mode = #tpu.pipeline_mode<synchronous>, transform_indices = @transform_5, window_bounds = array<i64: 32, 128>}, {pipeline_mode = #tpu.pipeline_mode<synchronous>, transform_indices = @transform_6, window_bounds = array<i64: 1, 128>}, {pipeline_mode = #tpu.pipeline_mode<synchronous>, transform_indices = @transform_7, window_bounds = array<i64: 8, 8, 32>}]} {
    %c0 = arith.constant 0 : index
    %c0_0 = arith.constant 0 : index
    %0 = vector.load %arg2[%c0, %c0_0] : memref<32x128xf32, #tpu.memory_space<vmem>>, vector<32x128xf32>
    %c0_1 = arith.constant 0 : index
    %c0_2 = arith.constant 0 : index
    %1 = vector.load %arg3[%c0_1, %c0_2] : memref<32x128xf32, #tpu.memory_space<vmem>>, vector<32x128xf32>
    %c0_3 = arith.constant 0 : index
    %c0_4 = arith.constant 0 : index
    %2 = vector.load %arg4[%c0_3, %c0_4] : memref<1x128xf32, #tpu.memory_space<vmem>>, vector<1x128xf32>
    %c0_5 = arith.constant 0 : index
    %c0_6 = arith.constant 0 : index
    %3 = vector.load %arg5[%c0_5, %c0_6] : memref<32x128xf32, #tpu.memory_space<vmem>>, vector<32x128xf32>
    %c0_7 = arith.constant 0 : index
    %c0_8 = arith.constant 0 : index
    %4 = vector.load %arg6[%c0_7, %c0_8] : memref<32x128xf32, #tpu.memory_space<vmem>>, vector<32x128xf32>
    %c0_9 = arith.constant 0 : index
    %c0_10 = arith.constant 0 : index
    %5 = vector.load %arg7[%c0_9, %c0_10] : memref<1x128xf32, #tpu.memory_space<vmem>>, vector<1x128xf32>
    %cst = arith.constant 0.000000e+00 : f32
    %6 = vector.broadcast %cst : f32 to vector<8x32xf32>
    %c0_11 = arith.constant 0 : index
    %c0_12 = arith.constant 0 : index
    %7 = vector.load %arg9[%c0_11, %c0_12] : memref<8x32xf32, #tpu.memory_space<vmem>>, vector<8x32xf32>
    tpu.vector_store %arg9[%c0_11, %c0_12], %6 {strides = array<i32>} : memref<8x32xf32, #tpu.memory_space<vmem>>, vector<8x32xf32>,
    %cst_13 = arith.constant 0.000000e+00 : f32
    %8 = vector.broadcast %cst_13 : f32 to vector<8x32xf32>
    %c0_14 = arith.constant 0 : index
    %c0_15 = arith.constant 0 : index
    %9 = vector.load %arg10[%c0_14, %c0_15] : memref<8x32xf32, #tpu.memory_space<vmem>>, vector<8x32xf32>
    tpu.vector_store %arg10[%c0_14, %c0_15], %8 {strides = array<i32>} : memref<8x32xf32, #tpu.memory_space<vmem>>, vector<8x32xf32>,
    %c0_i32 = arith.constant 0 : i32
    %10 = arith.index_cast %c0_i32 : i32 to index
    %c0_16 = arith.constant 0 : index
    %c0_17 = arith.constant 0 : index
    %11 = vector.load %arg1[%10, %c0_16, %c0_17] : memref<8x8x32xf32, #tpu.memory_space<vmem>>, vector<1x8x32xf32>
    %12 = vector.shape_cast %11 : vector<1x8x32xf32> to vector<8x32xf32>
    %c0_18 = arith.constant 0 : index
    %c0_19 = arith.constant 0 : index
    %13 = vector.load %arg9[%c0_18, %c0_19] : memref<8x32xf32, #tpu.memory_space<vmem>>, vector<8x32xf32>
    %c0_20 = arith.constant 0 : index
    %c0_21 = arith.constant 0 : index
    %14 = vector.load %arg10[%c0_20, %c0_21] : memref<8x32xf32, #tpu.memory_space<vmem>>, vector<8x32xf32>
    %cst_22 = arith.constant dense<0.000000e+00> : vector<8x128xf32>
    %15 = tpu.matmul %12, %0, %cst_22 {dimension_numbers = #tpu.dot_dimension_numbers<[1], [0], [0], [1], [0, 0, 1, 1], [], []>} : vector<8x32xf32>, vector<32x128xf32>, vector<8x128xf32> -> vector<8x128xf32>
    %cst_23 = arith.constant dense<0.000000e+00> : vector<8x128xf32>
    %16 = tpu.matmul %13, %1, %cst_23 {dimension_numbers = #tpu.dot_dimension_numbers<[1], [0], [0], [1], [0, 0, 1, 1], [], []>} : vector<8x32xf32>, vector<32x128xf32>, vector<8x128xf32> -> vector<8x128xf32>
    %17 = arith.addf %15, %16 : vector<8x128xf32>
    %18 = vector.broadcast %2 : vector<1x128xf32> to vector<8x128xf32>
    %19 = arith.addf %17, %18 : vector<8x128xf32>
    %20 = vector.extract_strided_slice %19 {offsets = [0, 0], sizes = [8, 32], strides = [1, 1]} : vector<8x128xf32> to vector<8x32xf32>
    %21 = arith.negf %20 : vector<8x32xf32>
    %22 = math.exp %21 : vector<8x32xf32>
    %cst_24 = arith.constant 1.000000e+00 : f32
    %23 = vector.broadcast %cst_24 : f32 to vector<8x32xf32>
    %24 = arith.addf %23, %22 : vector<8x32xf32>
    %25 = arith.divf %23, %24 : vector<8x32xf32>
    %26 = vector.extract_strided_slice %19 {offsets = [0, 32], sizes = [8, 32], strides = [1, 1]} : vector<8x128xf32> to vector<8x32xf32>
    %27 = arith.negf %26 : vector<8x32xf32>
    %28 = math.exp %27 : vector<8x32xf32>
    %cst_25 = arith.constant 1.000000e+00 : f32
    %29 = vector.broadcast %cst_25 : f32 to vector<8x32xf32>
    %30 = arith.addf %29, %28 : vector<8x32xf32>
    %31 = arith.divf %29, %30 : vector<8x32xf32>
    %32 = vector.extract_strided_slice %19 {offsets = [0, 64], sizes = [8, 32], strides = [1, 1]} : vector<8x128xf32> to vector<8x32xf32>
    %33 = math.tanh %32 : vector<8x32xf32>
    %34 = vector.extract_strided_slice %19 {offsets = [0, 96], sizes = [8, 32], strides = [1, 1]} : vector<8x128xf32> to vector<8x32xf32>
    %35 = arith.negf %34 : vector<8x32xf32>
    %36 = math.exp %35 : vector<8x32xf32>
    %cst_26 = arith.constant 1.000000e+00 : f32
    %37 = vector.broadcast %cst_26 : f32 to vector<8x32xf32>
    %38 = arith.addf %37, %36 : vector<8x32xf32>
    %39 = arith.divf %37, %38 : vector<8x32xf32>
    %40 = arith.mulf %31, %14 : vector<8x32xf32>
    %41 = arith.mulf %25, %33 : vector<8x32xf32>
    %42 = arith.addf %40, %41 : vector<8x32xf32>
    %43 = math.tanh %42 : vector<8x32xf32>
    %44 = arith.mulf %39, %43 : vector<8x32xf32>
    %c0_27 = arith.constant 0 : index
    %c0_28 = arith.constant 0 : index
    %45 = vector.load %arg9[%c0_27, %c0_28] : memref<8x32xf32, #tpu.memory_space<vmem>>, vector<8x32xf32>
    tpu.vector_store %arg9[%c0_27, %c0_28], %44 {strides = array<i32>} : memref<8x32xf32, #tpu.memory_space<vmem>>, vector<8x32xf32>,
    %c0_29 = arith.constant 0 : index
    %c0_30 = arith.constant 0 : index
    %46 = vector.load %arg10[%c0_29, %c0_30] : memref<8x32xf32, #tpu.memory_space<vmem>>, vector<8x32xf32>
    tpu.vector_store %arg10[%c0_29, %c0_30], %42 {strides = array<i32>} : memref<8x32xf32, #tpu.memory_space<vmem>>, vector<8x32xf32>,
    %47 = arith.index_cast %c0_i32 : i32 to index
    %c0_31 = arith.constant 0 : index
    %c0_32 = arith.constant 0 : index
    %48 = vector.load %arg11[%47, %c0_31, %c0_32] : memref<8x8x32xf32, #tpu.memory_space<vmem>>, vector<1x8x32xf32>
    %49 = vector.shape_cast %48 : vector<1x8x32xf32> to vector<8x32xf32>
    %50 = vector.shape_cast %44 : vector<8x32xf32> to vector<1x8x32xf32>
    tpu.vector_store %arg11[%47, %c0_31, %c0_32], %50 {strides = array<i32>} : memref<8x8x32xf32, #tpu.memory_space<vmem>>, vector<1x8x32xf32>,
    %c1_i32 = arith.constant 1 : i32
    %51 = arith.index_cast %c1_i32 : i32 to index
    %c0_33 = arith.constant 0 : index
    %c0_34 = arith.constant 0 : index
    %52 = vector.load %arg1[%51, %c0_33, %c0_34] : memref<8x8x32xf32, #tpu.memory_space<vmem>>, vector<1x8x32xf32>
    %53 = vector.shape_cast %52 : vector<1x8x32xf32> to vector<8x32xf32>
    %c0_35 = arith.constant 0 : index
    %c0_36 = arith.constant 0 : index
    %54 = vector.load %arg9[%c0_35, %c0_36] : memref<8x32xf32, #tpu.memory_space<vmem>>, vector<8x32xf32>
    %c0_37 = arith.constant 0 : index
    %c0_38 = arith.constant 0 : index
    %55 = vector.load %arg10[%c0_37, %c0_38] : memref<8x32xf32, #tpu.memory_space<vmem>>, vector<8x32xf32>
    %cst_39 = arith.constant dense<0.000000e+00> : vector<8x128xf32>
    %56 = tpu.matmul %53, %0, %cst_39 {dimension_numbers = #tpu.dot_dimension_numbers<[1], [0], [0], [1], [0, 0, 1, 1], [], []>} : vector<8x32xf32>, vector<32x128xf32>, vector<8x128xf32> -> vector<8x128xf32>
    %cst_40 = arith.constant dense<0.000000e+00> : vector<8x128xf32>
    %57 = tpu.matmul %54, %1, %cst_40 {dimension_numbers = #tpu.dot_dimension_numbers<[1], [0], [0], [1], [0, 0, 1, 1], [], []>} : vector<8x32xf32>, vector<32x128xf32>, vector<8x128xf32> -> vector<8x128xf32>
    %58 = arith.addf %56, %57 : vector<8x128xf32>
    %59 = vector.broadcast %2 : vector<1x128xf32> to vector<8x128xf32>
    %60 = arith.addf %58, %59 : vector<8x128xf32>
    %61 = vector.extract_strided_slice %60 {offsets = [0, 0], sizes = [8, 32], strides = [1, 1]} : vector<8x128xf32> to vector<8x32xf32>
    %62 = arith.negf %61 : vector<8x32xf32>
    %63 = math.exp %62 : vector<8x32xf32>
    %cst_41 = arith.constant 1.000000e+00 : f32
    %64 = vector.broadcast %cst_41 : f32 to vector<8x32xf32>
    %65 = arith.addf %64, %63 : vector<8x32xf32>
    %66 = arith.divf %64, %65 : vector<8x32xf32>
    %67 = vector.extract_strided_slice %60 {offsets = [0, 32], sizes = [8, 32], strides = [1, 1]} : vector<8x128xf32> to vector<8x32xf32>
    %68 = arith.negf %67 : vector<8x32xf32>
    %69 = math.exp %68 : vector<8x32xf32>
    %cst_42 = arith.constant 1.000000e+00 : f32
    %70 = vector.broadcast %cst_42 : f32 to vector<8x32xf32>
    %71 = arith.addf %70, %69 : vector<8x32xf32>
    %72 = arith.divf %70, %71 : vector<8x32xf32>
    %73 = vector.extract_strided_slice %60 {offsets = [0, 64], sizes = [8, 32], strides = [1, 1]} : vector<8x128xf32> to vector<8x32xf32>
    %74 = math.tanh %73 : vector<8x32xf32>
    %75 = vector.extract_strided_slice %60 {offsets = [0, 96], sizes = [8, 32], strides = [1, 1]} : vector<8x128xf32> to vector<8x32xf32>
    %76 = arith.negf %75 : vector<8x32xf32>
    %77 = math.exp %76 : vector<8x32xf32>
    %cst_43 = arith.constant 1.000000e+00 : f32
    %78 = vector.broadcast %cst_43 : f32 to vector<8x32xf32>
    %79 = arith.addf %78, %77 : vector<8x32xf32>
    %80 = arith.divf %78, %79 : vector<8x32xf32>
    %81 = arith.mulf %72, %55 : vector<8x32xf32>
    %82 = arith.mulf %66, %74 : vector<8x32xf32>
    %83 = arith.addf %81, %82 : vector<8x32xf32>
    %84 = math.tanh %83 : vector<8x32xf32>
    %85 = arith.mulf %80, %84 : vector<8x32xf32>
    %c0_44 = arith.constant 0 : index
    %c0_45 = arith.constant 0 : index
    %86 = vector.load %arg9[%c0_44, %c0_45] : memref<8x32xf32, #tpu.memory_space<vmem>>, vector<8x32xf32>
    tpu.vector_store %arg9[%c0_44, %c0_45], %85 {strides = array<i32>} : memref<8x32xf32, #tpu.memory_space<vmem>>, vector<8x32xf32>,
    %c0_46 = arith.constant 0 : index
    %c0_47 = arith.constant 0 : index
    %87 = vector.load %arg10[%c0_46, %c0_47] : memref<8x32xf32, #tpu.memory_space<vmem>>, vector<8x32xf32>
    tpu.vector_store %arg10[%c0_46, %c0_47], %83 {strides = array<i32>} : memref<8x32xf32, #tpu.memory_space<vmem>>, vector<8x32xf32>,
    %88 = arith.index_cast %c1_i32 : i32 to index
    %c0_48 = arith.constant 0 : index
    %c0_49 = arith.constant 0 : index
    %89 = vector.load %arg11[%88, %c0_48, %c0_49] : memref<8x8x32xf32, #tpu.memory_space<vmem>>, vector<1x8x32xf32>
    %90 = vector.shape_cast %89 : vector<1x8x32xf32> to vector<8x32xf32>
    %91 = vector.shape_cast %85 : vector<8x32xf32> to vector<1x8x32xf32>
    tpu.vector_store %arg11[%88, %c0_48, %c0_49], %91 {strides = array<i32>} : memref<8x8x32xf32, #tpu.memory_space<vmem>>, vector<1x8x32xf32>,
    %c2_i32 = arith.constant 2 : i32
    %92 = arith.index_cast %c2_i32 : i32 to index
    %c0_50 = arith.constant 0 : index
    %c0_51 = arith.constant 0 : index
    %93 = vector.load %arg1[%92, %c0_50, %c0_51] : memref<8x8x32xf32, #tpu.memory_space<vmem>>, vector<1x8x32xf32>
    %94 = vector.shape_cast %93 : vector<1x8x32xf32> to vector<8x32xf32>
    %c0_52 = arith.constant 0 : index
    %c0_53 = arith.constant 0 : index
    %95 = vector.load %arg9[%c0_52, %c0_53] : memref<8x32xf32, #tpu.memory_space<vmem>>, vector<8x32xf32>
    %c0_54 = arith.constant 0 : index
    %c0_55 = arith.constant 0 : index
    %96 = vector.load %arg10[%c0_54, %c0_55] : memref<8x32xf32, #tpu.memory_space<vmem>>, vector<8x32xf32>
    %cst_56 = arith.constant dense<0.000000e+00> : vector<8x128xf32>
    %97 = tpu.matmul %94, %0, %cst_56 {dimension_numbers = #tpu.dot_dimension_numbers<[1], [0], [0], [1], [0, 0, 1, 1], [], []>} : vector<8x32xf32>, vector<32x128xf32>, vector<8x128xf32> -> vector<8x128xf32>
    %cst_57 = arith.constant dense<0.000000e+00> : vector<8x128xf32>
    %98 = tpu.matmul %95, %1, %cst_57 {dimension_numbers = #tpu.dot_dimension_numbers<[1], [0], [0], [1], [0, 0, 1, 1], [], []>} : vector<8x32xf32>, vector<32x128xf32>, vector<8x128xf32> -> vector<8x128xf32>
    %99 = arith.addf %97, %98 : vector<8x128xf32>
    %100 = vector.broadcast %2 : vector<1x128xf32> to vector<8x128xf32>
    %101 = arith.addf %99, %100 : vector<8x128xf32>
    %102 = vector.extract_strided_slice %101 {offsets = [0, 0], sizes = [8, 32], strides = [1, 1]} : vector<8x128xf32> to vector<8x32xf32>
    %103 = arith.negf %102 : vector<8x32xf32>
    %104 = math.exp %103 : vector<8x32xf32>
    %cst_58 = arith.constant 1.000000e+00 : f32
    %105 = vector.broadcast %cst_58 : f32 to vector<8x32xf32>
    %106 = arith.addf %105, %104 : vector<8x32xf32>
    %107 = arith.divf %105, %106 : vector<8x32xf32>
    %108 = vector.extract_strided_slice %101 {offsets = [0, 32], sizes = [8, 32], strides = [1, 1]} : vector<8x128xf32> to vector<8x32xf32>
    %109 = arith.negf %108 : vector<8x32xf32>
    %110 = math.exp %109 : vector<8x32xf32>
    %cst_59 = arith.constant 1.000000e+00 : f32
    %111 = vector.broadcast %cst_59 : f32 to vector<8x32xf32>
    %112 = arith.addf %111, %110 : vector<8x32xf32>
    %113 = arith.divf %111, %112 : vector<8x32xf32>
    %114 = vector.extract_strided_slice %101 {offsets = [0, 64], sizes = [8, 32], strides = [1, 1]} : vector<8x128xf32> to vector<8x32xf32>
    %115 = math.tanh %114 : vector<8x32xf32>
    %116 = vector.extract_strided_slice %101 {offsets = [0, 96], sizes = [8, 32], strides = [1, 1]} : vector<8x128xf32> to vector<8x32xf32>
    %117 = arith.negf %116 : vector<8x32xf32>
    %118 = math.exp %117 : vector<8x32xf32>
    %cst_60 = arith.constant 1.000000e+00 : f32
    %119 = vector.broadcast %cst_60 : f32 to vector<8x32xf32>
    %120 = arith.addf %119, %118 : vector<8x32xf32>
    %121 = arith.divf %119, %120 : vector<8x32xf32>
    %122 = arith.mulf %113, %96 : vector<8x32xf32>
    %123 = arith.mulf %107, %115 : vector<8x32xf32>
    %124 = arith.addf %122, %123 : vector<8x32xf32>
    %125 = math.tanh %124 : vector<8x32xf32>
    %126 = arith.mulf %121, %125 : vector<8x32xf32>
    %c0_61 = arith.constant 0 : index
    %c0_62 = arith.constant 0 : index
    %127 = vector.load %arg9[%c0_61, %c0_62] : memref<8x32xf32, #tpu.memory_space<vmem>>, vector<8x32xf32>
    tpu.vector_store %arg9[%c0_61, %c0_62], %126 {strides = array<i32>} : memref<8x32xf32, #tpu.memory_space<vmem>>, vector<8x32xf32>,
    %c0_63 = arith.constant 0 : index
    %c0_64 = arith.constant 0 : index
    %128 = vector.load %arg10[%c0_63, %c0_64] : memref<8x32xf32, #tpu.memory_space<vmem>>, vector<8x32xf32>
    tpu.vector_store %arg10[%c0_63, %c0_64], %124 {strides = array<i32>} : memref<8x32xf32, #tpu.memory_space<vmem>>, vector<8x32xf32>,
    %129 = arith.index_cast %c2_i32 : i32 to index
    %c0_65 = arith.constant 0 : index
    %c0_66 = arith.constant 0 : index
    %130 = vector.load %arg11[%129, %c0_65, %c0_66] : memref<8x8x32xf32, #tpu.memory_space<vmem>>, vector<1x8x32xf32>
    %131 = vector.shape_cast %130 : vector<1x8x32xf32> to vector<8x32xf32>
    %132 = vector.shape_cast %126 : vector<8x32xf32> to vector<1x8x32xf32>
    tpu.vector_store %arg11[%129, %c0_65, %c0_66], %132 {strides = array<i32>} : memref<8x8x32xf32, #tpu.memory_space<vmem>>, vector<1x8x32xf32>,
    %c3_i32 = arith.constant 3 : i32
    %133 = arith.index_cast %c3_i32 : i32 to index
    %c0_67 = arith.constant 0 : index
    %c0_68 = arith.constant 0 : index
    %134 = vector.load %arg1[%133, %c0_67, %c0_68] : memref<8x8x32xf32, #tpu.memory_space<vmem>>, vector<1x8x32xf32>
    %135 = vector.shape_cast %134 : vector<1x8x32xf32> to vector<8x32xf32>
    %c0_69 = arith.constant 0 : index
    %c0_70 = arith.constant 0 : index
    %136 = vector.load %arg9[%c0_69, %c0_70] : memref<8x32xf32, #tpu.memory_space<vmem>>, vector<8x32xf32>
    %c0_71 = arith.constant 0 : index
    %c0_72 = arith.constant 0 : index
    %137 = vector.load %arg10[%c0_71, %c0_72] : memref<8x32xf32, #tpu.memory_space<vmem>>, vector<8x32xf32>
    %cst_73 = arith.constant dense<0.000000e+00> : vector<8x128xf32>
    %138 = tpu.matmul %135, %0, %cst_73 {dimension_numbers = #tpu.dot_dimension_numbers<[1], [0], [0], [1], [0, 0, 1, 1], [], []>} : vector<8x32xf32>, vector<32x128xf32>, vector<8x128xf32> -> vector<8x128xf32>
    %cst_74 = arith.constant dense<0.000000e+00> : vector<8x128xf32>
    %139 = tpu.matmul %136, %1, %cst_74 {dimension_numbers = #tpu.dot_dimension_numbers<[1], [0], [0], [1], [0, 0, 1, 1], [], []>} : vector<8x32xf32>, vector<32x128xf32>, vector<8x128xf32> -> vector<8x128xf32>
    %140 = arith.addf %138, %139 : vector<8x128xf32>
    %141 = vector.broadcast %2 : vector<1x128xf32> to vector<8x128xf32>
    %142 = arith.addf %140, %141 : vector<8x128xf32>
    %143 = vector.extract_strided_slice %142 {offsets = [0, 0], sizes = [8, 32], strides = [1, 1]} : vector<8x128xf32> to vector<8x32xf32>
    %144 = arith.negf %143 : vector<8x32xf32>
    %145 = math.exp %144 : vector<8x32xf32>
    %cst_75 = arith.constant 1.000000e+00 : f32
    %146 = vector.broadcast %cst_75 : f32 to vector<8x32xf32>
    %147 = arith.addf %146, %145 : vector<8x32xf32>
    %148 = arith.divf %146, %147 : vector<8x32xf32>
    %149 = vector.extract_strided_slice %142 {offsets = [0, 32], sizes = [8, 32], strides = [1, 1]} : vector<8x128xf32> to vector<8x32xf32>
    %150 = arith.negf %149 : vector<8x32xf32>
    %151 = math.exp %150 : vector<8x32xf32>
    %cst_76 = arith.constant 1.000000e+00 : f32
    %152 = vector.broadcast %cst_76 : f32 to vector<8x32xf32>
    %153 = arith.addf %152, %151 : vector<8x32xf32>
    %154 = arith.divf %152, %153 : vector<8x32xf32>
    %155 = vector.extract_strided_slice %142 {offsets = [0, 64], sizes = [8, 32], strides = [1, 1]} : vector<8x128xf32> to vector<8x32xf32>
    %156 = math.tanh %155 : vector<8x32xf32>
    %157 = vector.extract_strided_slice %142 {offsets = [0, 96], sizes = [8, 32], strides = [1, 1]} : vector<8x128xf32> to vector<8x32xf32>
    %158 = arith.negf %157 : vector<8x32xf32>
    %159 = math.exp %158 : vector<8x32xf32>
    %cst_77 = arith.constant 1.000000e+00 : f32
    %160 = vector.broadcast %cst_77 : f32 to vector<8x32xf32>
    %161 = arith.addf %160, %159 : vector<8x32xf32>
    %162 = arith.divf %160, %161 : vector<8x32xf32>
    %163 = arith.mulf %154, %137 : vector<8x32xf32>
    %164 = arith.mulf %148, %156 : vector<8x32xf32>
    %165 = arith.addf %163, %164 : vector<8x32xf32>
    %166 = math.tanh %165 : vector<8x32xf32>
    %167 = arith.mulf %162, %166 : vector<8x32xf32>
    %c0_78 = arith.constant 0 : index
    %c0_79 = arith.constant 0 : index
    %168 = vector.load %arg9[%c0_78, %c0_79] : memref<8x32xf32, #tpu.memory_space<vmem>>, vector<8x32xf32>
    tpu.vector_store %arg9[%c0_78, %c0_79], %167 {strides = array<i32>} : memref<8x32xf32, #tpu.memory_space<vmem>>, vector<8x32xf32>,
    %c0_80 = arith.constant 0 : index
    %c0_81 = arith.constant 0 : index
    %169 = vector.load %arg10[%c0_80, %c0_81] : memref<8x32xf32, #tpu.memory_space<vmem>>, vector<8x32xf32>
    tpu.vector_store %arg10[%c0_80, %c0_81], %165 {strides = array<i32>} : memref<8x32xf32, #tpu.memory_space<vmem>>, vector<8x32xf32>,
    %170 = arith.index_cast %c3_i32 : i32 to index
    %c0_82 = arith.constant 0 : index
    %c0_83 = arith.constant 0 : index
    %171 = vector.load %arg11[%170, %c0_82, %c0_83] : memref<8x8x32xf32, #tpu.memory_space<vmem>>, vector<1x8x32xf32>
    %172 = vector.shape_cast %171 : vector<1x8x32xf32> to vector<8x32xf32>
    %173 = vector.shape_cast %167 : vector<8x32xf32> to vector<1x8x32xf32>
    tpu.vector_store %arg11[%170, %c0_82, %c0_83], %173 {strides = array<i32>} : memref<8x8x32xf32, #tpu.memory_space<vmem>>, vector<1x8x32xf32>,
    %c4_i32 = arith.constant 4 : i32
    %174 = arith.index_cast %c4_i32 : i32 to index
    %c0_84 = arith.constant 0 : index
    %c0_85 = arith.constant 0 : index
    %175 = vector.load %arg1[%174, %c0_84, %c0_85] : memref<8x8x32xf32, #tpu.memory_space<vmem>>, vector<1x8x32xf32>
    %176 = vector.shape_cast %175 : vector<1x8x32xf32> to vector<8x32xf32>
    %c0_86 = arith.constant 0 : index
    %c0_87 = arith.constant 0 : index
    %177 = vector.load %arg9[%c0_86, %c0_87] : memref<8x32xf32, #tpu.memory_space<vmem>>, vector<8x32xf32>
    %c0_88 = arith.constant 0 : index
    %c0_89 = arith.constant 0 : index
    %178 = vector.load %arg10[%c0_88, %c0_89] : memref<8x32xf32, #tpu.memory_space<vmem>>, vector<8x32xf32>
    %cst_90 = arith.constant dense<0.000000e+00> : vector<8x128xf32>
    %179 = tpu.matmul %176, %0, %cst_90 {dimension_numbers = #tpu.dot_dimension_numbers<[1], [0], [0], [1], [0, 0, 1, 1], [], []>} : vector<8x32xf32>, vector<32x128xf32>, vector<8x128xf32> -> vector<8x128xf32>
    %cst_91 = arith.constant dense<0.000000e+00> : vector<8x128xf32>
    %180 = tpu.matmul %177, %1, %cst_91 {dimension_numbers = #tpu.dot_dimension_numbers<[1], [0], [0], [1], [0, 0, 1, 1], [], []>} : vector<8x32xf32>, vector<32x128xf32>, vector<8x128xf32> -> vector<8x128xf32>
    %181 = arith.addf %179, %180 : vector<8x128xf32>
    %182 = vector.broadcast %2 : vector<1x128xf32> to vector<8x128xf32>
    %183 = arith.addf %181, %182 : vector<8x128xf32>
    %184 = vector.extract_strided_slice %183 {offsets = [0, 0], sizes = [8, 32], strides = [1, 1]} : vector<8x128xf32> to vector<8x32xf32>
    %185 = arith.negf %184 : vector<8x32xf32>
    %186 = math.exp %185 : vector<8x32xf32>
    %cst_92 = arith.constant 1.000000e+00 : f32
    %187 = vector.broadcast %cst_92 : f32 to vector<8x32xf32>
    %188 = arith.addf %187, %186 : vector<8x32xf32>
    %189 = arith.divf %187, %188 : vector<8x32xf32>
    %190 = vector.extract_strided_slice %183 {offsets = [0, 32], sizes = [8, 32], strides = [1, 1]} : vector<8x128xf32> to vector<8x32xf32>
    %191 = arith.negf %190 : vector<8x32xf32>
    %192 = math.exp %191 : vector<8x32xf32>
    %cst_93 = arith.constant 1.000000e+00 : f32
    %193 = vector.broadcast %cst_93 : f32 to vector<8x32xf32>
    %194 = arith.addf %193, %192 : vector<8x32xf32>
    %195 = arith.divf %193, %194 : vector<8x32xf32>
    %196 = vector.extract_strided_slice %183 {offsets = [0, 64], sizes = [8, 32], strides = [1, 1]} : vector<8x128xf32> to vector<8x32xf32>
    %197 = math.tanh %196 : vector<8x32xf32>
    %198 = vector.extract_strided_slice %183 {offsets = [0, 96], sizes = [8, 32], strides = [1, 1]} : vector<8x128xf32> to vector<8x32xf32>
    %199 = arith.negf %198 : vector<8x32xf32>
    %200 = math.exp %199 : vector<8x32xf32>
    %cst_94 = arith.constant 1.000000e+00 : f32
    %201 = vector.broadcast %cst_94 : f32 to vector<8x32xf32>
    %202 = arith.addf %201, %200 : vector<8x32xf32>
    %203 = arith.divf %201, %202 : vector<8x32xf32>
    %204 = arith.mulf %195, %178 : vector<8x32xf32>
    %205 = arith.mulf %189, %197 : vector<8x32xf32>
    %206 = arith.addf %204, %205 : vector<8x32xf32>
    %207 = math.tanh %206 : vector<8x32xf32>
    %208 = arith.mulf %203, %207 : vector<8x32xf32>
    %c0_95 = arith.constant 0 : index
    %c0_96 = arith.constant 0 : index
    %209 = vector.load %arg9[%c0_95, %c0_96] : memref<8x32xf32, #tpu.memory_space<vmem>>, vector<8x32xf32>
    tpu.vector_store %arg9[%c0_95, %c0_96], %208 {strides = array<i32>} : memref<8x32xf32, #tpu.memory_space<vmem>>, vector<8x32xf32>,
    %c0_97 = arith.constant 0 : index
    %c0_98 = arith.constant 0 : index
    %210 = vector.load %arg10[%c0_97, %c0_98] : memref<8x32xf32, #tpu.memory_space<vmem>>, vector<8x32xf32>
    tpu.vector_store %arg10[%c0_97, %c0_98], %206 {strides = array<i32>} : memref<8x32xf32, #tpu.memory_space<vmem>>, vector<8x32xf32>,
    %211 = arith.index_cast %c4_i32 : i32 to index
    %c0_99 = arith.constant 0 : index
    %c0_100 = arith.constant 0 : index
    %212 = vector.load %arg11[%211, %c0_99, %c0_100] : memref<8x8x32xf32, #tpu.memory_space<vmem>>, vector<1x8x32xf32>
    %213 = vector.shape_cast %212 : vector<1x8x32xf32> to vector<8x32xf32>
    %214 = vector.shape_cast %208 : vector<8x32xf32> to vector<1x8x32xf32>
    tpu.vector_store %arg11[%211, %c0_99, %c0_100], %214 {strides = array<i32>} : memref<8x8x32xf32, #tpu.memory_space<vmem>>, vector<1x8x32xf32>,
    %c5_i32 = arith.constant 5 : i32
    %215 = arith.index_cast %c5_i32 : i32 to index
    %c0_101 = arith.constant 0 : index
    %c0_102 = arith.constant 0 : index
    %216 = vector.load %arg1[%215, %c0_101, %c0_102] : memref<8x8x32xf32, #tpu.memory_space<vmem>>, vector<1x8x32xf32>
    %217 = vector.shape_cast %216 : vector<1x8x32xf32> to vector<8x32xf32>
    %c0_103 = arith.constant 0 : index
    %c0_104 = arith.constant 0 : index
    %218 = vector.load %arg9[%c0_103, %c0_104] : memref<8x32xf32, #tpu.memory_space<vmem>>, vector<8x32xf32>
    %c0_105 = arith.constant 0 : index
    %c0_106 = arith.constant 0 : index
    %219 = vector.load %arg10[%c0_105, %c0_106] : memref<8x32xf32, #tpu.memory_space<vmem>>, vector<8x32xf32>
    %cst_107 = arith.constant dense<0.000000e+00> : vector<8x128xf32>
    %220 = tpu.matmul %217, %0, %cst_107 {dimension_numbers = #tpu.dot_dimension_numbers<[1], [0], [0], [1], [0, 0, 1, 1], [], []>} : vector<8x32xf32>, vector<32x128xf32>, vector<8x128xf32> -> vector<8x128xf32>
    %cst_108 = arith.constant dense<0.000000e+00> : vector<8x128xf32>
    %221 = tpu.matmul %218, %1, %cst_108 {dimension_numbers = #tpu.dot_dimension_numbers<[1], [0], [0], [1], [0, 0, 1, 1], [], []>} : vector<8x32xf32>, vector<32x128xf32>, vector<8x128xf32> -> vector<8x128xf32>
    %222 = arith.addf %220, %221 : vector<8x128xf32>
    %223 = vector.broadcast %2 : vector<1x128xf32> to vector<8x128xf32>
    %224 = arith.addf %222, %223 : vector<8x128xf32>
    %225 = vector.extract_strided_slice %224 {offsets = [0, 0], sizes = [8, 32], strides = [1, 1]} : vector<8x128xf32> to vector<8x32xf32>
    %226 = arith.negf %225 : vector<8x32xf32>
    %227 = math.exp %226 : vector<8x32xf32>
    %cst_109 = arith.constant 1.000000e+00 : f32
    %228 = vector.broadcast %cst_109 : f32 to vector<8x32xf32>
    %229 = arith.addf %228, %227 : vector<8x32xf32>
    %230 = arith.divf %228, %229 : vector<8x32xf32>
    %231 = vector.extract_strided_slice %224 {offsets = [0, 32], sizes = [8, 32], strides = [1, 1]} : vector<8x128xf32> to vector<8x32xf32>
    %232 = arith.negf %231 : vector<8x32xf32>
    %233 = math.exp %232 : vector<8x32xf32>
    %cst_110 = arith.constant 1.000000e+00 : f32
    %234 = vector.broadcast %cst_110 : f32 to vector<8x32xf32>
    %235 = arith.addf %234, %233 : vector<8x32xf32>
    %236 = arith.divf %234, %235 : vector<8x32xf32>
    %237 = vector.extract_strided_slice %224 {offsets = [0, 64], sizes = [8, 32], strides = [1, 1]} : vector<8x128xf32> to vector<8x32xf32>
    %238 = math.tanh %237 : vector<8x32xf32>
    %239 = vector.extract_strided_slice %224 {offsets = [0, 96], sizes = [8, 32], strides = [1, 1]} : vector<8x128xf32> to vector<8x32xf32>
    %240 = arith.negf %239 : vector<8x32xf32>
    %241 = math.exp %240 : vector<8x32xf32>
    %cst_111 = arith.constant 1.000000e+00 : f32
    %242 = vector.broadcast %cst_111 : f32 to vector<8x32xf32>
    %243 = arith.addf %242, %241 : vector<8x32xf32>
    %244 = arith.divf %242, %243 : vector<8x32xf32>
    %245 = arith.mulf %236, %219 : vector<8x32xf32>
    %246 = arith.mulf %230, %238 : vector<8x32xf32>
    %247 = arith.addf %245, %246 : vector<8x32xf32>
    %248 = math.tanh %247 : vector<8x32xf32>
    %249 = arith.mulf %244, %248 : vector<8x32xf32>
    %c0_112 = arith.constant 0 : index
    %c0_113 = arith.constant 0 : index
    %250 = vector.load %arg9[%c0_112, %c0_113] : memref<8x32xf32, #tpu.memory_space<vmem>>, vector<8x32xf32>
    tpu.vector_store %arg9[%c0_112, %c0_113], %249 {strides = array<i32>} : memref<8x32xf32, #tpu.memory_space<vmem>>, vector<8x32xf32>,
    %c0_114 = arith.constant 0 : index
    %c0_115 = arith.constant 0 : index
    %251 = vector.load %arg10[%c0_114, %c0_115] : memref<8x32xf32, #tpu.memory_space<vmem>>, vector<8x32xf32>
    tpu.vector_store %arg10[%c0_114, %c0_115], %247 {strides = array<i32>} : memref<8x32xf32, #tpu.memory_space<vmem>>, vector<8x32xf32>,
    %252 = arith.index_cast %c5_i32 : i32 to index
    %c0_116 = arith.constant 0 : index
    %c0_117 = arith.constant 0 : index
    %253 = vector.load %arg11[%252, %c0_116, %c0_117] : memref<8x8x32xf32, #tpu.memory_space<vmem>>, vector<1x8x32xf32>
    %254 = vector.shape_cast %253 : vector<1x8x32xf32> to vector<8x32xf32>
    %255 = vector.shape_cast %249 : vector<8x32xf32> to vector<1x8x32xf32>
    tpu.vector_store %arg11[%252, %c0_116, %c0_117], %255 {strides = array<i32>} : memref<8x8x32xf32, #tpu.memory_space<vmem>>, vector<1x8x32xf32>,
    %c6_i32 = arith.constant 6 : i32
    %256 = arith.index_cast %c6_i32 : i32 to index
    %c0_118 = arith.constant 0 : index
    %c0_119 = arith.constant 0 : index
    %257 = vector.load %arg1[%256, %c0_118, %c0_119] : memref<8x8x32xf32, #tpu.memory_space<vmem>>, vector<1x8x32xf32>
    %258 = vector.shape_cast %257 : vector<1x8x32xf32> to vector<8x32xf32>
    %c0_120 = arith.constant 0 : index
    %c0_121 = arith.constant 0 : index
    %259 = vector.load %arg9[%c0_120, %c0_121] : memref<8x32xf32, #tpu.memory_space<vmem>>, vector<8x32xf32>
    %c0_122 = arith.constant 0 : index
    %c0_123 = arith.constant 0 : index
    %260 = vector.load %arg10[%c0_122, %c0_123] : memref<8x32xf32, #tpu.memory_space<vmem>>, vector<8x32xf32>
    %cst_124 = arith.constant dense<0.000000e+00> : vector<8x128xf32>
    %261 = tpu.matmul %258, %0, %cst_124 {dimension_numbers = #tpu.dot_dimension_numbers<[1], [0], [0], [1], [0, 0, 1, 1], [], []>} : vector<8x32xf32>, vector<32x128xf32>, vector<8x128xf32> -> vector<8x128xf32>
    %cst_125 = arith.constant dense<0.000000e+00> : vector<8x128xf32>
    %262 = tpu.matmul %259, %1, %cst_125 {dimension_numbers = #tpu.dot_dimension_numbers<[1], [0], [0], [1], [0, 0, 1, 1], [], []>} : vector<8x32xf32>, vector<32x128xf32>, vector<8x128xf32> -> vector<8x128xf32>
    %263 = arith.addf %261, %262 : vector<8x128xf32>
    %264 = vector.broadcast %2 : vector<1x128xf32> to vector<8x128xf32>
    %265 = arith.addf %263, %264 : vector<8x128xf32>
    %266 = vector.extract_strided_slice %265 {offsets = [0, 0], sizes = [8, 32], strides = [1, 1]} : vector<8x128xf32> to vector<8x32xf32>
    %267 = arith.negf %266 : vector<8x32xf32>
    %268 = math.exp %267 : vector<8x32xf32>
    %cst_126 = arith.constant 1.000000e+00 : f32
    %269 = vector.broadcast %cst_126 : f32 to vector<8x32xf32>
    %270 = arith.addf %269, %268 : vector<8x32xf32>
    %271 = arith.divf %269, %270 : vector<8x32xf32>
    %272 = vector.extract_strided_slice %265 {offsets = [0, 32], sizes = [8, 32], strides = [1, 1]} : vector<8x128xf32> to vector<8x32xf32>
    %273 = arith.negf %272 : vector<8x32xf32>
    %274 = math.exp %273 : vector<8x32xf32>
    %cst_127 = arith.constant 1.000000e+00 : f32
    %275 = vector.broadcast %cst_127 : f32 to vector<8x32xf32>
    %276 = arith.addf %275, %274 : vector<8x32xf32>
    %277 = arith.divf %275, %276 : vector<8x32xf32>
    %278 = vector.extract_strided_slice %265 {offsets = [0, 64], sizes = [8, 32], strides = [1, 1]} : vector<8x128xf32> to vector<8x32xf32>
    %279 = math.tanh %278 : vector<8x32xf32>
    %280 = vector.extract_strided_slice %265 {offsets = [0, 96], sizes = [8, 32], strides = [1, 1]} : vector<8x128xf32> to vector<8x32xf32>
    %281 = arith.negf %280 : vector<8x32xf32>
    %282 = math.exp %281 : vector<8x32xf32>
    %cst_128 = arith.constant 1.000000e+00 : f32
    %283 = vector.broadcast %cst_128 : f32 to vector<8x32xf32>
    %284 = arith.addf %283, %282 : vector<8x32xf32>
    %285 = arith.divf %283, %284 : vector<8x32xf32>
    %286 = arith.mulf %277, %260 : vector<8x32xf32>
    %287 = arith.mulf %271, %279 : vector<8x32xf32>
    %288 = arith.addf %286, %287 : vector<8x32xf32>
    %289 = math.tanh %288 : vector<8x32xf32>
    %290 = arith.mulf %285, %289 : vector<8x32xf32>
    %c0_129 = arith.constant 0 : index
    %c0_130 = arith.constant 0 : index
    %291 = vector.load %arg9[%c0_129, %c0_130] : memref<8x32xf32, #tpu.memory_space<vmem>>, vector<8x32xf32>
    tpu.vector_store %arg9[%c0_129, %c0_130], %290 {strides = array<i32>} : memref<8x32xf32, #tpu.memory_space<vmem>>, vector<8x32xf32>,
    %c0_131 = arith.constant 0 : index
    %c0_132 = arith.constant 0 : index
    %292 = vector.load %arg10[%c0_131, %c0_132] : memref<8x32xf32, #tpu.memory_space<vmem>>, vector<8x32xf32>
    tpu.vector_store %arg10[%c0_131, %c0_132], %288 {strides = array<i32>} : memref<8x32xf32, #tpu.memory_space<vmem>>, vector<8x32xf32>,
    %293 = arith.index_cast %c6_i32 : i32 to index
    %c0_133 = arith.constant 0 : index
    %c0_134 = arith.constant 0 : index
    %294 = vector.load %arg11[%293, %c0_133, %c0_134] : memref<8x8x32xf32, #tpu.memory_space<vmem>>, vector<1x8x32xf32>
    %295 = vector.shape_cast %294 : vector<1x8x32xf32> to vector<8x32xf32>
    %296 = vector.shape_cast %290 : vector<8x32xf32> to vector<1x8x32xf32>
    tpu.vector_store %arg11[%293, %c0_133, %c0_134], %296 {strides = array<i32>} : memref<8x8x32xf32, #tpu.memory_space<vmem>>, vector<1x8x32xf32>,
    %c7_i32 = arith.constant 7 : i32
    %297 = arith.index_cast %c7_i32 : i32 to index
    %c0_135 = arith.constant 0 : index
    %c0_136 = arith.constant 0 : index
    %298 = vector.load %arg1[%297, %c0_135, %c0_136] : memref<8x8x32xf32, #tpu.memory_space<vmem>>, vector<1x8x32xf32>
    %299 = vector.shape_cast %298 : vector<1x8x32xf32> to vector<8x32xf32>
    %c0_137 = arith.constant 0 : index
    %c0_138 = arith.constant 0 : index
    %300 = vector.load %arg9[%c0_137, %c0_138] : memref<8x32xf32, #tpu.memory_space<vmem>>, vector<8x32xf32>
    %c0_139 = arith.constant 0 : index
    %c0_140 = arith.constant 0 : index
    %301 = vector.load %arg10[%c0_139, %c0_140] : memref<8x32xf32, #tpu.memory_space<vmem>>, vector<8x32xf32>
    %cst_141 = arith.constant dense<0.000000e+00> : vector<8x128xf32>
    %302 = tpu.matmul %299, %0, %cst_141 {dimension_numbers = #tpu.dot_dimension_numbers<[1], [0], [0], [1], [0, 0, 1, 1], [], []>} : vector<8x32xf32>, vector<32x128xf32>, vector<8x128xf32> -> vector<8x128xf32>
    %cst_142 = arith.constant dense<0.000000e+00> : vector<8x128xf32>
    %303 = tpu.matmul %300, %1, %cst_142 {dimension_numbers = #tpu.dot_dimension_numbers<[1], [0], [0], [1], [0, 0, 1, 1], [], []>} : vector<8x32xf32>, vector<32x128xf32>, vector<8x128xf32> -> vector<8x128xf32>
    %304 = arith.addf %302, %303 : vector<8x128xf32>
    %305 = vector.broadcast %2 : vector<1x128xf32> to vector<8x128xf32>
    %306 = arith.addf %304, %305 : vector<8x128xf32>
    %307 = vector.extract_strided_slice %306 {offsets = [0, 0], sizes = [8, 32], strides = [1, 1]} : vector<8x128xf32> to vector<8x32xf32>
    %308 = arith.negf %307 : vector<8x32xf32>
    %309 = math.exp %308 : vector<8x32xf32>
    %cst_143 = arith.constant 1.000000e+00 : f32
    %310 = vector.broadcast %cst_143 : f32 to vector<8x32xf32>
    %311 = arith.addf %310, %309 : vector<8x32xf32>
    %312 = arith.divf %310, %311 : vector<8x32xf32>
    %313 = vector.extract_strided_slice %306 {offsets = [0, 32], sizes = [8, 32], strides = [1, 1]} : vector<8x128xf32> to vector<8x32xf32>
    %314 = arith.negf %313 : vector<8x32xf32>
    %315 = math.exp %314 : vector<8x32xf32>
    %cst_144 = arith.constant 1.000000e+00 : f32
    %316 = vector.broadcast %cst_144 : f32 to vector<8x32xf32>
    %317 = arith.addf %316, %315 : vector<8x32xf32>
    %318 = arith.divf %316, %317 : vector<8x32xf32>
    %319 = vector.extract_strided_slice %306 {offsets = [0, 64], sizes = [8, 32], strides = [1, 1]} : vector<8x128xf32> to vector<8x32xf32>
    %320 = math.tanh %319 : vector<8x32xf32>
    %321 = vector.extract_strided_slice %306 {offsets = [0, 96], sizes = [8, 32], strides = [1, 1]} : vector<8x128xf32> to vector<8x32xf32>
    %322 = arith.negf %321 : vector<8x32xf32>
    %323 = math.exp %322 : vector<8x32xf32>
    %cst_145 = arith.constant 1.000000e+00 : f32
    %324 = vector.broadcast %cst_145 : f32 to vector<8x32xf32>
    %325 = arith.addf %324, %323 : vector<8x32xf32>
    %326 = arith.divf %324, %325 : vector<8x32xf32>
    %327 = arith.mulf %318, %301 : vector<8x32xf32>
    %328 = arith.mulf %312, %320 : vector<8x32xf32>
    %329 = arith.addf %327, %328 : vector<8x32xf32>
    %330 = math.tanh %329 : vector<8x32xf32>
    %331 = arith.mulf %326, %330 : vector<8x32xf32>
    %c0_146 = arith.constant 0 : index
    %c0_147 = arith.constant 0 : index
    %332 = vector.load %arg9[%c0_146, %c0_147] : memref<8x32xf32, #tpu.memory_space<vmem>>, vector<8x32xf32>
    tpu.vector_store %arg9[%c0_146, %c0_147], %331 {strides = array<i32>} : memref<8x32xf32, #tpu.memory_space<vmem>>, vector<8x32xf32>,
    %c0_148 = arith.constant 0 : index
    %c0_149 = arith.constant 0 : index
    %333 = vector.load %arg10[%c0_148, %c0_149] : memref<8x32xf32, #tpu.memory_space<vmem>>, vector<8x32xf32>
    tpu.vector_store %arg10[%c0_148, %c0_149], %329 {strides = array<i32>} : memref<8x32xf32, #tpu.memory_space<vmem>>, vector<8x32xf32>,
    %334 = arith.index_cast %c7_i32 : i32 to index
    %c0_150 = arith.constant 0 : index
    %c0_151 = arith.constant 0 : index
    %335 = vector.load %arg11[%334, %c0_150, %c0_151] : memref<8x8x32xf32, #tpu.memory_space<vmem>>, vector<1x8x32xf32>
    %336 = vector.shape_cast %335 : vector<1x8x32xf32> to vector<8x32xf32>
    %337 = vector.shape_cast %331 : vector<8x32xf32> to vector<1x8x32xf32>
    tpu.vector_store %arg11[%334, %c0_150, %c0_151], %337 {strides = array<i32>} : memref<8x8x32xf32, #tpu.memory_space<vmem>>, vector<1x8x32xf32>,
    %c8_i32 = arith.constant 8 : i32
    %cst_152 = arith.constant 0.000000e+00 : f32
    %338 = vector.broadcast %cst_152 : f32 to vector<8x32xf32>
    %c0_153 = arith.constant 0 : index
    %c0_154 = arith.constant 0 : index
    %339 = vector.load %arg9[%c0_153, %c0_154] : memref<8x32xf32, #tpu.memory_space<vmem>>, vector<8x32xf32>
    tpu.vector_store %arg9[%c0_153, %c0_154], %338 {strides = array<i32>} : memref<8x32xf32, #tpu.memory_space<vmem>>, vector<8x32xf32>,
    %cst_155 = arith.constant 0.000000e+00 : f32
    %340 = vector.broadcast %cst_155 : f32 to vector<8x32xf32>
    %c0_156 = arith.constant 0 : index
    %c0_157 = arith.constant 0 : index
    %341 = vector.load %arg10[%c0_156, %c0_157] : memref<8x32xf32, #tpu.memory_space<vmem>>, vector<8x32xf32>
    tpu.vector_store %arg10[%c0_156, %c0_157], %340 {strides = array<i32>} : memref<8x32xf32, #tpu.memory_space<vmem>>, vector<8x32xf32>,
    %c0_i32_158 = arith.constant 0 : i32
    %342 = arith.index_cast %c0_i32_158 : i32 to index
    %c0_159 = arith.constant 0 : index
    %c0_160 = arith.constant 0 : index
    %343 = vector.load %arg11[%342, %c0_159, %c0_160] : memref<8x8x32xf32, #tpu.memory_space<vmem>>, vector<1x8x32xf32>
    %344 = vector.shape_cast %343 : vector<1x8x32xf32> to vector<8x32xf32>
    %c0_161 = arith.constant 0 : index
    %c0_162 = arith.constant 0 : index
    %345 = vector.load %arg9[%c0_161, %c0_162] : memref<8x32xf32, #tpu.memory_space<vmem>>, vector<8x32xf32>
    %c0_163 = arith.constant 0 : index
    %c0_164 = arith.constant 0 : index
    %346 = vector.load %arg10[%c0_163, %c0_164] : memref<8x32xf32, #tpu.memory_space<vmem>>, vector<8x32xf32>
    %cst_165 = arith.constant dense<0.000000e+00> : vector<8x128xf32>
    %347 = tpu.matmul %344, %3, %cst_165 {dimension_numbers = #tpu.dot_dimension_numbers<[1], [0], [0], [1], [0, 0, 1, 1], [], []>} : vector<8x32xf32>, vector<32x128xf32>, vector<8x128xf32> -> vector<8x128xf32>
    %cst_166 = arith.constant dense<0.000000e+00> : vector<8x128xf32>
    %348 = tpu.matmul %345, %4, %cst_166 {dimension_numbers = #tpu.dot_dimension_numbers<[1], [0], [0], [1], [0, 0, 1, 1], [], []>} : vector<8x32xf32>, vector<32x128xf32>, vector<8x128xf32> -> vector<8x128xf32>
    %349 = arith.addf %347, %348 : vector<8x128xf32>
    %350 = vector.broadcast %5 : vector<1x128xf32> to vector<8x128xf32>
    %351 = arith.addf %349, %350 : vector<8x128xf32>
    %352 = vector.extract_strided_slice %351 {offsets = [0, 0], sizes = [8, 32], strides = [1, 1]} : vector<8x128xf32> to vector<8x32xf32>
    %353 = arith.negf %352 : vector<8x32xf32>
    %354 = math.exp %353 : vector<8x32xf32>
    %cst_167 = arith.constant 1.000000e+00 : f32
    %355 = vector.broadcast %cst_167 : f32 to vector<8x32xf32>
    %356 = arith.addf %355, %354 : vector<8x32xf32>
    %357 = arith.divf %355, %356 : vector<8x32xf32>
    %358 = vector.extract_strided_slice %351 {offsets = [0, 32], sizes = [8, 32], strides = [1, 1]} : vector<8x128xf32> to vector<8x32xf32>
    %359 = arith.negf %358 : vector<8x32xf32>
    %360 = math.exp %359 : vector<8x32xf32>
    %cst_168 = arith.constant 1.000000e+00 : f32
    %361 = vector.broadcast %cst_168 : f32 to vector<8x32xf32>
    %362 = arith.addf %361, %360 : vector<8x32xf32>
    %363 = arith.divf %361, %362 : vector<8x32xf32>
    %364 = vector.extract_strided_slice %351 {offsets = [0, 64], sizes = [8, 32], strides = [1, 1]} : vector<8x128xf32> to vector<8x32xf32>
    %365 = math.tanh %364 : vector<8x32xf32>
    %366 = vector.extract_strided_slice %351 {offsets = [0, 96], sizes = [8, 32], strides = [1, 1]} : vector<8x128xf32> to vector<8x32xf32>
    %367 = arith.negf %366 : vector<8x32xf32>
    %368 = math.exp %367 : vector<8x32xf32>
    %cst_169 = arith.constant 1.000000e+00 : f32
    %369 = vector.broadcast %cst_169 : f32 to vector<8x32xf32>
    %370 = arith.addf %369, %368 : vector<8x32xf32>
    %371 = arith.divf %369, %370 : vector<8x32xf32>
    %372 = arith.mulf %363, %346 : vector<8x32xf32>
    %373 = arith.mulf %357, %365 : vector<8x32xf32>
    %374 = arith.addf %372, %373 : vector<8x32xf32>
    %375 = math.tanh %374 : vector<8x32xf32>
    %376 = arith.mulf %371, %375 : vector<8x32xf32>
    %c0_170 = arith.constant 0 : index
    %c0_171 = arith.constant 0 : index
    %377 = vector.load %arg9[%c0_170, %c0_171] : memref<8x32xf32, #tpu.memory_space<vmem>>, vector<8x32xf32>
    tpu.vector_store %arg9[%c0_170, %c0_171], %376 {strides = array<i32>} : memref<8x32xf32, #tpu.memory_space<vmem>>, vector<8x32xf32>,
    %c0_172 = arith.constant 0 : index
    %c0_173 = arith.constant 0 : index
    %378 = vector.load %arg10[%c0_172, %c0_173] : memref<8x32xf32, #tpu.memory_space<vmem>>, vector<8x32xf32>
    tpu.vector_store %arg10[%c0_172, %c0_173], %374 {strides = array<i32>} : memref<8x32xf32, #tpu.memory_space<vmem>>, vector<8x32xf32>,
    %379 = arith.index_cast %c0_i32_158 : i32 to index
    %c0_174 = arith.constant 0 : index
    %c0_175 = arith.constant 0 : index
    %380 = vector.load %arg8[%379, %c0_174, %c0_175] : memref<8x8x32xf32, #tpu.memory_space<vmem>>, vector<1x8x32xf32>
    %381 = vector.shape_cast %380 : vector<1x8x32xf32> to vector<8x32xf32>
    %382 = vector.shape_cast %376 : vector<8x32xf32> to vector<1x8x32xf32>
    tpu.vector_store %arg8[%379, %c0_174, %c0_175], %382 {strides = array<i32>} : memref<8x8x32xf32, #tpu.memory_space<vmem>>, vector<1x8x32xf32>,
    %c1_i32_176 = arith.constant 1 : i32
    %383 = arith.index_cast %c1_i32_176 : i32 to index
    %c0_177 = arith.constant 0 : index
    %c0_178 = arith.constant 0 : index
    %384 = vector.load %arg11[%383, %c0_177, %c0_178] : memref<8x8x32xf32, #tpu.memory_space<vmem>>, vector<1x8x32xf32>
    %385 = vector.shape_cast %384 : vector<1x8x32xf32> to vector<8x32xf32>
    %c0_179 = arith.constant 0 : index
    %c0_180 = arith.constant 0 : index
    %386 = vector.load %arg9[%c0_179, %c0_180] : memref<8x32xf32, #tpu.memory_space<vmem>>, vector<8x32xf32>
    %c0_181 = arith.constant 0 : index
    %c0_182 = arith.constant 0 : index
    %387 = vector.load %arg10[%c0_181, %c0_182] : memref<8x32xf32, #tpu.memory_space<vmem>>, vector<8x32xf32>
    %cst_183 = arith.constant dense<0.000000e+00> : vector<8x128xf32>
    %388 = tpu.matmul %385, %3, %cst_183 {dimension_numbers = #tpu.dot_dimension_numbers<[1], [0], [0], [1], [0, 0, 1, 1], [], []>} : vector<8x32xf32>, vector<32x128xf32>, vector<8x128xf32> -> vector<8x128xf32>
    %cst_184 = arith.constant dense<0.000000e+00> : vector<8x128xf32>
    %389 = tpu.matmul %386, %4, %cst_184 {dimension_numbers = #tpu.dot_dimension_numbers<[1], [0], [0], [1], [0, 0, 1, 1], [], []>} : vector<8x32xf32>, vector<32x128xf32>, vector<8x128xf32> -> vector<8x128xf32>
    %390 = arith.addf %388, %389 : vector<8x128xf32>
    %391 = vector.broadcast %5 : vector<1x128xf32> to vector<8x128xf32>
    %392 = arith.addf %390, %391 : vector<8x128xf32>
    %393 = vector.extract_strided_slice %392 {offsets = [0, 0], sizes = [8, 32], strides = [1, 1]} : vector<8x128xf32> to vector<8x32xf32>
    %394 = arith.negf %393 : vector<8x32xf32>
    %395 = math.exp %394 : vector<8x32xf32>
    %cst_185 = arith.constant 1.000000e+00 : f32
    %396 = vector.broadcast %cst_185 : f32 to vector<8x32xf32>
    %397 = arith.addf %396, %395 : vector<8x32xf32>
    %398 = arith.divf %396, %397 : vector<8x32xf32>
    %399 = vector.extract_strided_slice %392 {offsets = [0, 32], sizes = [8, 32], strides = [1, 1]} : vector<8x128xf32> to vector<8x32xf32>
    %400 = arith.negf %399 : vector<8x32xf32>
    %401 = math.exp %400 : vector<8x32xf32>
    %cst_186 = arith.constant 1.000000e+00 : f32
    %402 = vector.broadcast %cst_186 : f32 to vector<8x32xf32>
    %403 = arith.addf %402, %401 : vector<8x32xf32>
    %404 = arith.divf %402, %403 : vector<8x32xf32>
    %405 = vector.extract_strided_slice %392 {offsets = [0, 64], sizes = [8, 32], strides = [1, 1]} : vector<8x128xf32> to vector<8x32xf32>
    %406 = math.tanh %405 : vector<8x32xf32>
    %407 = vector.extract_strided_slice %392 {offsets = [0, 96], sizes = [8, 32], strides = [1, 1]} : vector<8x128xf32> to vector<8x32xf32>
    %408 = arith.negf %407 : vector<8x32xf32>
    %409 = math.exp %408 : vector<8x32xf32>
    %cst_187 = arith.constant 1.000000e+00 : f32
    %410 = vector.broadcast %cst_187 : f32 to vector<8x32xf32>
    %411 = arith.addf %410, %409 : vector<8x32xf32>
    %412 = arith.divf %410, %411 : vector<8x32xf32>
    %413 = arith.mulf %404, %387 : vector<8x32xf32>
    %414 = arith.mulf %398, %406 : vector<8x32xf32>
    %415 = arith.addf %413, %414 : vector<8x32xf32>
    %416 = math.tanh %415 : vector<8x32xf32>
    %417 = arith.mulf %412, %416 : vector<8x32xf32>
    %c0_188 = arith.constant 0 : index
    %c0_189 = arith.constant 0 : index
    %418 = vector.load %arg9[%c0_188, %c0_189] : memref<8x32xf32, #tpu.memory_space<vmem>>, vector<8x32xf32>
    tpu.vector_store %arg9[%c0_188, %c0_189], %417 {strides = array<i32>} : memref<8x32xf32, #tpu.memory_space<vmem>>, vector<8x32xf32>,
    %c0_190 = arith.constant 0 : index
    %c0_191 = arith.constant 0 : index
    %419 = vector.load %arg10[%c0_190, %c0_191] : memref<8x32xf32, #tpu.memory_space<vmem>>, vector<8x32xf32>
    tpu.vector_store %arg10[%c0_190, %c0_191], %415 {strides = array<i32>} : memref<8x32xf32, #tpu.memory_space<vmem>>, vector<8x32xf32>,
    %420 = arith.index_cast %c1_i32_176 : i32 to index
    %c0_192 = arith.constant 0 : index
    %c0_193 = arith.constant 0 : index
    %421 = vector.load %arg8[%420, %c0_192, %c0_193] : memref<8x8x32xf32, #tpu.memory_space<vmem>>, vector<1x8x32xf32>
    %422 = vector.shape_cast %421 : vector<1x8x32xf32> to vector<8x32xf32>
    %423 = vector.shape_cast %417 : vector<8x32xf32> to vector<1x8x32xf32>
    tpu.vector_store %arg8[%420, %c0_192, %c0_193], %423 {strides = array<i32>} : memref<8x8x32xf32, #tpu.memory_space<vmem>>, vector<1x8x32xf32>,
    %c2_i32_194 = arith.constant 2 : i32
    %424 = arith.index_cast %c2_i32_194 : i32 to index
    %c0_195 = arith.constant 0 : index
    %c0_196 = arith.constant 0 : index
    %425 = vector.load %arg11[%424, %c0_195, %c0_196] : memref<8x8x32xf32, #tpu.memory_space<vmem>>, vector<1x8x32xf32>
    %426 = vector.shape_cast %425 : vector<1x8x32xf32> to vector<8x32xf32>
    %c0_197 = arith.constant 0 : index
    %c0_198 = arith.constant 0 : index
    %427 = vector.load %arg9[%c0_197, %c0_198] : memref<8x32xf32, #tpu.memory_space<vmem>>, vector<8x32xf32>
    %c0_199 = arith.constant 0 : index
    %c0_200 = arith.constant 0 : index
    %428 = vector.load %arg10[%c0_199, %c0_200] : memref<8x32xf32, #tpu.memory_space<vmem>>, vector<8x32xf32>
    %cst_201 = arith.constant dense<0.000000e+00> : vector<8x128xf32>
    %429 = tpu.matmul %426, %3, %cst_201 {dimension_numbers = #tpu.dot_dimension_numbers<[1], [0], [0], [1], [0, 0, 1, 1], [], []>} : vector<8x32xf32>, vector<32x128xf32>, vector<8x128xf32> -> vector<8x128xf32>
    %cst_202 = arith.constant dense<0.000000e+00> : vector<8x128xf32>
    %430 = tpu.matmul %427, %4, %cst_202 {dimension_numbers = #tpu.dot_dimension_numbers<[1], [0], [0], [1], [0, 0, 1, 1], [], []>} : vector<8x32xf32>, vector<32x128xf32>, vector<8x128xf32> -> vector<8x128xf32>
    %431 = arith.addf %429, %430 : vector<8x128xf32>
    %432 = vector.broadcast %5 : vector<1x128xf32> to vector<8x128xf32>
    %433 = arith.addf %431, %432 : vector<8x128xf32>
    %434 = vector.extract_strided_slice %433 {offsets = [0, 0], sizes = [8, 32], strides = [1, 1]} : vector<8x128xf32> to vector<8x32xf32>
    %435 = arith.negf %434 : vector<8x32xf32>
    %436 = math.exp %435 : vector<8x32xf32>
    %cst_203 = arith.constant 1.000000e+00 : f32
    %437 = vector.broadcast %cst_203 : f32 to vector<8x32xf32>
    %438 = arith.addf %437, %436 : vector<8x32xf32>
    %439 = arith.divf %437, %438 : vector<8x32xf32>
    %440 = vector.extract_strided_slice %433 {offsets = [0, 32], sizes = [8, 32], strides = [1, 1]} : vector<8x128xf32> to vector<8x32xf32>
    %441 = arith.negf %440 : vector<8x32xf32>
    %442 = math.exp %441 : vector<8x32xf32>
    %cst_204 = arith.constant 1.000000e+00 : f32
    %443 = vector.broadcast %cst_204 : f32 to vector<8x32xf32>
    %444 = arith.addf %443, %442 : vector<8x32xf32>
    %445 = arith.divf %443, %444 : vector<8x32xf32>
    %446 = vector.extract_strided_slice %433 {offsets = [0, 64], sizes = [8, 32], strides = [1, 1]} : vector<8x128xf32> to vector<8x32xf32>
    %447 = math.tanh %446 : vector<8x32xf32>
    %448 = vector.extract_strided_slice %433 {offsets = [0, 96], sizes = [8, 32], strides = [1, 1]} : vector<8x128xf32> to vector<8x32xf32>
    %449 = arith.negf %448 : vector<8x32xf32>
    %450 = math.exp %449 : vector<8x32xf32>
    %cst_205 = arith.constant 1.000000e+00 : f32
    %451 = vector.broadcast %cst_205 : f32 to vector<8x32xf32>
    %452 = arith.addf %451, %450 : vector<8x32xf32>
    %453 = arith.divf %451, %452 : vector<8x32xf32>
    %454 = arith.mulf %445, %428 : vector<8x32xf32>
    %455 = arith.mulf %439, %447 : vector<8x32xf32>
    %456 = arith.addf %454, %455 : vector<8x32xf32>
    %457 = math.tanh %456 : vector<8x32xf32>
    %458 = arith.mulf %453, %457 : vector<8x32xf32>
    %c0_206 = arith.constant 0 : index
    %c0_207 = arith.constant 0 : index
    %459 = vector.load %arg9[%c0_206, %c0_207] : memref<8x32xf32, #tpu.memory_space<vmem>>, vector<8x32xf32>
    tpu.vector_store %arg9[%c0_206, %c0_207], %458 {strides = array<i32>} : memref<8x32xf32, #tpu.memory_space<vmem>>, vector<8x32xf32>,
    %c0_208 = arith.constant 0 : index
    %c0_209 = arith.constant 0 : index
    %460 = vector.load %arg10[%c0_208, %c0_209] : memref<8x32xf32, #tpu.memory_space<vmem>>, vector<8x32xf32>
    tpu.vector_store %arg10[%c0_208, %c0_209], %456 {strides = array<i32>} : memref<8x32xf32, #tpu.memory_space<vmem>>, vector<8x32xf32>,
    %461 = arith.index_cast %c2_i32_194 : i32 to index
    %c0_210 = arith.constant 0 : index
    %c0_211 = arith.constant 0 : index
    %462 = vector.load %arg8[%461, %c0_210, %c0_211] : memref<8x8x32xf32, #tpu.memory_space<vmem>>, vector<1x8x32xf32>
    %463 = vector.shape_cast %462 : vector<1x8x32xf32> to vector<8x32xf32>
    %464 = vector.shape_cast %458 : vector<8x32xf32> to vector<1x8x32xf32>
    tpu.vector_store %arg8[%461, %c0_210, %c0_211], %464 {strides = array<i32>} : memref<8x8x32xf32, #tpu.memory_space<vmem>>, vector<1x8x32xf32>,
    %c3_i32_212 = arith.constant 3 : i32
    %465 = arith.index_cast %c3_i32_212 : i32 to index
    %c0_213 = arith.constant 0 : index
    %c0_214 = arith.constant 0 : index
    %466 = vector.load %arg11[%465, %c0_213, %c0_214] : memref<8x8x32xf32, #tpu.memory_space<vmem>>, vector<1x8x32xf32>
    %467 = vector.shape_cast %466 : vector<1x8x32xf32> to vector<8x32xf32>
    %c0_215 = arith.constant 0 : index
    %c0_216 = arith.constant 0 : index
    %468 = vector.load %arg9[%c0_215, %c0_216] : memref<8x32xf32, #tpu.memory_space<vmem>>, vector<8x32xf32>
    %c0_217 = arith.constant 0 : index
    %c0_218 = arith.constant 0 : index
    %469 = vector.load %arg10[%c0_217, %c0_218] : memref<8x32xf32, #tpu.memory_space<vmem>>, vector<8x32xf32>
    %cst_219 = arith.constant dense<0.000000e+00> : vector<8x128xf32>
    %470 = tpu.matmul %467, %3, %cst_219 {dimension_numbers = #tpu.dot_dimension_numbers<[1], [0], [0], [1], [0, 0, 1, 1], [], []>} : vector<8x32xf32>, vector<32x128xf32>, vector<8x128xf32> -> vector<8x128xf32>
    %cst_220 = arith.constant dense<0.000000e+00> : vector<8x128xf32>
    %471 = tpu.matmul %468, %4, %cst_220 {dimension_numbers = #tpu.dot_dimension_numbers<[1], [0], [0], [1], [0, 0, 1, 1], [], []>} : vector<8x32xf32>, vector<32x128xf32>, vector<8x128xf32> -> vector<8x128xf32>
    %472 = arith.addf %470, %471 : vector<8x128xf32>
    %473 = vector.broadcast %5 : vector<1x128xf32> to vector<8x128xf32>
    %474 = arith.addf %472, %473 : vector<8x128xf32>
    %475 = vector.extract_strided_slice %474 {offsets = [0, 0], sizes = [8, 32], strides = [1, 1]} : vector<8x128xf32> to vector<8x32xf32>
    %476 = arith.negf %475 : vector<8x32xf32>
    %477 = math.exp %476 : vector<8x32xf32>
    %cst_221 = arith.constant 1.000000e+00 : f32
    %478 = vector.broadcast %cst_221 : f32 to vector<8x32xf32>
    %479 = arith.addf %478, %477 : vector<8x32xf32>
    %480 = arith.divf %478, %479 : vector<8x32xf32>
    %481 = vector.extract_strided_slice %474 {offsets = [0, 32], sizes = [8, 32], strides = [1, 1]} : vector<8x128xf32> to vector<8x32xf32>
    %482 = arith.negf %481 : vector<8x32xf32>
    %483 = math.exp %482 : vector<8x32xf32>
    %cst_222 = arith.constant 1.000000e+00 : f32
    %484 = vector.broadcast %cst_222 : f32 to vector<8x32xf32>
    %485 = arith.addf %484, %483 : vector<8x32xf32>
    %486 = arith.divf %484, %485 : vector<8x32xf32>
    %487 = vector.extract_strided_slice %474 {offsets = [0, 64], sizes = [8, 32], strides = [1, 1]} : vector<8x128xf32> to vector<8x32xf32>
    %488 = math.tanh %487 : vector<8x32xf32>
    %489 = vector.extract_strided_slice %474 {offsets = [0, 96], sizes = [8, 32], strides = [1, 1]} : vector<8x128xf32> to vector<8x32xf32>
    %490 = arith.negf %489 : vector<8x32xf32>
    %491 = math.exp %490 : vector<8x32xf32>
    %cst_223 = arith.constant 1.000000e+00 : f32
    %492 = vector.broadcast %cst_223 : f32 to vector<8x32xf32>
    %493 = arith.addf %492, %491 : vector<8x32xf32>
    %494 = arith.divf %492, %493 : vector<8x32xf32>
    %495 = arith.mulf %486, %469 : vector<8x32xf32>
    %496 = arith.mulf %480, %488 : vector<8x32xf32>
    %497 = arith.addf %495, %496 : vector<8x32xf32>
    %498 = math.tanh %497 : vector<8x32xf32>
    %499 = arith.mulf %494, %498 : vector<8x32xf32>
    %c0_224 = arith.constant 0 : index
    %c0_225 = arith.constant 0 : index
    %500 = vector.load %arg9[%c0_224, %c0_225] : memref<8x32xf32, #tpu.memory_space<vmem>>, vector<8x32xf32>
    tpu.vector_store %arg9[%c0_224, %c0_225], %499 {strides = array<i32>} : memref<8x32xf32, #tpu.memory_space<vmem>>, vector<8x32xf32>,
    %c0_226 = arith.constant 0 : index
    %c0_227 = arith.constant 0 : index
    %501 = vector.load %arg10[%c0_226, %c0_227] : memref<8x32xf32, #tpu.memory_space<vmem>>, vector<8x32xf32>
    tpu.vector_store %arg10[%c0_226, %c0_227], %497 {strides = array<i32>} : memref<8x32xf32, #tpu.memory_space<vmem>>, vector<8x32xf32>,
    %502 = arith.index_cast %c3_i32_212 : i32 to index
    %c0_228 = arith.constant 0 : index
    %c0_229 = arith.constant 0 : index
    %503 = vector.load %arg8[%502, %c0_228, %c0_229] : memref<8x8x32xf32, #tpu.memory_space<vmem>>, vector<1x8x32xf32>
    %504 = vector.shape_cast %503 : vector<1x8x32xf32> to vector<8x32xf32>
    %505 = vector.shape_cast %499 : vector<8x32xf32> to vector<1x8x32xf32>
    tpu.vector_store %arg8[%502, %c0_228, %c0_229], %505 {strides = array<i32>} : memref<8x8x32xf32, #tpu.memory_space<vmem>>, vector<1x8x32xf32>,
    %c4_i32_230 = arith.constant 4 : i32
    %506 = arith.index_cast %c4_i32_230 : i32 to index
    %c0_231 = arith.constant 0 : index
    %c0_232 = arith.constant 0 : index
    %507 = vector.load %arg11[%506, %c0_231, %c0_232] : memref<8x8x32xf32, #tpu.memory_space<vmem>>, vector<1x8x32xf32>
    %508 = vector.shape_cast %507 : vector<1x8x32xf32> to vector<8x32xf32>
    %c0_233 = arith.constant 0 : index
    %c0_234 = arith.constant 0 : index
    %509 = vector.load %arg9[%c0_233, %c0_234] : memref<8x32xf32, #tpu.memory_space<vmem>>, vector<8x32xf32>
    %c0_235 = arith.constant 0 : index
    %c0_236 = arith.constant 0 : index
    %510 = vector.load %arg10[%c0_235, %c0_236] : memref<8x32xf32, #tpu.memory_space<vmem>>, vector<8x32xf32>
    %cst_237 = arith.constant dense<0.000000e+00> : vector<8x128xf32>
    %511 = tpu.matmul %508, %3, %cst_237 {dimension_numbers = #tpu.dot_dimension_numbers<[1], [0], [0], [1], [0, 0, 1, 1], [], []>} : vector<8x32xf32>, vector<32x128xf32>, vector<8x128xf32> -> vector<8x128xf32>
    %cst_238 = arith.constant dense<0.000000e+00> : vector<8x128xf32>
    %512 = tpu.matmul %509, %4, %cst_238 {dimension_numbers = #tpu.dot_dimension_numbers<[1], [0], [0], [1], [0, 0, 1, 1], [], []>} : vector<8x32xf32>, vector<32x128xf32>, vector<8x128xf32> -> vector<8x128xf32>
    %513 = arith.addf %511, %512 : vector<8x128xf32>
    %514 = vector.broadcast %5 : vector<1x128xf32> to vector<8x128xf32>
    %515 = arith.addf %513, %514 : vector<8x128xf32>
    %516 = vector.extract_strided_slice %515 {offsets = [0, 0], sizes = [8, 32], strides = [1, 1]} : vector<8x128xf32> to vector<8x32xf32>
    %517 = arith.negf %516 : vector<8x32xf32>
    %518 = math.exp %517 : vector<8x32xf32>
    %cst_239 = arith.constant 1.000000e+00 : f32
    %519 = vector.broadcast %cst_239 : f32 to vector<8x32xf32>
    %520 = arith.addf %519, %518 : vector<8x32xf32>
    %521 = arith.divf %519, %520 : vector<8x32xf32>
    %522 = vector.extract_strided_slice %515 {offsets = [0, 32], sizes = [8, 32], strides = [1, 1]} : vector<8x128xf32> to vector<8x32xf32>
    %523 = arith.negf %522 : vector<8x32xf32>
    %524 = math.exp %523 : vector<8x32xf32>
    %cst_240 = arith.constant 1.000000e+00 : f32
    %525 = vector.broadcast %cst_240 : f32 to vector<8x32xf32>
    %526 = arith.addf %525, %524 : vector<8x32xf32>
    %527 = arith.divf %525, %526 : vector<8x32xf32>
    %528 = vector.extract_strided_slice %515 {offsets = [0, 64], sizes = [8, 32], strides = [1, 1]} : vector<8x128xf32> to vector<8x32xf32>
    %529 = math.tanh %528 : vector<8x32xf32>
    %530 = vector.extract_strided_slice %515 {offsets = [0, 96], sizes = [8, 32], strides = [1, 1]} : vector<8x128xf32> to vector<8x32xf32>
    %531 = arith.negf %530 : vector<8x32xf32>
    %532 = math.exp %531 : vector<8x32xf32>
    %cst_241 = arith.constant 1.000000e+00 : f32
    %533 = vector.broadcast %cst_241 : f32 to vector<8x32xf32>
    %534 = arith.addf %533, %532 : vector<8x32xf32>
    %535 = arith.divf %533, %534 : vector<8x32xf32>
    %536 = arith.mulf %527, %510 : vector<8x32xf32>
    %537 = arith.mulf %521, %529 : vector<8x32xf32>
    %538 = arith.addf %536, %537 : vector<8x32xf32>
    %539 = math.tanh %538 : vector<8x32xf32>
    %540 = arith.mulf %535, %539 : vector<8x32xf32>
    %c0_242 = arith.constant 0 : index
    %c0_243 = arith.constant 0 : index
    %541 = vector.load %arg9[%c0_242, %c0_243] : memref<8x32xf32, #tpu.memory_space<vmem>>, vector<8x32xf32>
    tpu.vector_store %arg9[%c0_242, %c0_243], %540 {strides = array<i32>} : memref<8x32xf32, #tpu.memory_space<vmem>>, vector<8x32xf32>,
    %c0_244 = arith.constant 0 : index
    %c0_245 = arith.constant 0 : index
    %542 = vector.load %arg10[%c0_244, %c0_245] : memref<8x32xf32, #tpu.memory_space<vmem>>, vector<8x32xf32>
    tpu.vector_store %arg10[%c0_244, %c0_245], %538 {strides = array<i32>} : memref<8x32xf32, #tpu.memory_space<vmem>>, vector<8x32xf32>,
    %543 = arith.index_cast %c4_i32_230 : i32 to index
    %c0_246 = arith.constant 0 : index
    %c0_247 = arith.constant 0 : index
    %544 = vector.load %arg8[%543, %c0_246, %c0_247] : memref<8x8x32xf32, #tpu.memory_space<vmem>>, vector<1x8x32xf32>
    %545 = vector.shape_cast %544 : vector<1x8x32xf32> to vector<8x32xf32>
    %546 = vector.shape_cast %540 : vector<8x32xf32> to vector<1x8x32xf32>
    tpu.vector_store %arg8[%543, %c0_246, %c0_247], %546 {strides = array<i32>} : memref<8x8x32xf32, #tpu.memory_space<vmem>>, vector<1x8x32xf32>,
    %c5_i32_248 = arith.constant 5 : i32
    %547 = arith.index_cast %c5_i32_248 : i32 to index
    %c0_249 = arith.constant 0 : index
    %c0_250 = arith.constant 0 : index
    %548 = vector.load %arg11[%547, %c0_249, %c0_250] : memref<8x8x32xf32, #tpu.memory_space<vmem>>, vector<1x8x32xf32>
    %549 = vector.shape_cast %548 : vector<1x8x32xf32> to vector<8x32xf32>
    %c0_251 = arith.constant 0 : index
    %c0_252 = arith.constant 0 : index
    %550 = vector.load %arg9[%c0_251, %c0_252] : memref<8x32xf32, #tpu.memory_space<vmem>>, vector<8x32xf32>
    %c0_253 = arith.constant 0 : index
    %c0_254 = arith.constant 0 : index
    %551 = vector.load %arg10[%c0_253, %c0_254] : memref<8x32xf32, #tpu.memory_space<vmem>>, vector<8x32xf32>
    %cst_255 = arith.constant dense<0.000000e+00> : vector<8x128xf32>
    %552 = tpu.matmul %549, %3, %cst_255 {dimension_numbers = #tpu.dot_dimension_numbers<[1], [0], [0], [1], [0, 0, 1, 1], [], []>} : vector<8x32xf32>, vector<32x128xf32>, vector<8x128xf32> -> vector<8x128xf32>
    %cst_256 = arith.constant dense<0.000000e+00> : vector<8x128xf32>
    %553 = tpu.matmul %550, %4, %cst_256 {dimension_numbers = #tpu.dot_dimension_numbers<[1], [0], [0], [1], [0, 0, 1, 1], [], []>} : vector<8x32xf32>, vector<32x128xf32>, vector<8x128xf32> -> vector<8x128xf32>
    %554 = arith.addf %552, %553 : vector<8x128xf32>
    %555 = vector.broadcast %5 : vector<1x128xf32> to vector<8x128xf32>
    %556 = arith.addf %554, %555 : vector<8x128xf32>
    %557 = vector.extract_strided_slice %556 {offsets = [0, 0], sizes = [8, 32], strides = [1, 1]} : vector<8x128xf32> to vector<8x32xf32>
    %558 = arith.negf %557 : vector<8x32xf32>
    %559 = math.exp %558 : vector<8x32xf32>
    %cst_257 = arith.constant 1.000000e+00 : f32
    %560 = vector.broadcast %cst_257 : f32 to vector<8x32xf32>
    %561 = arith.addf %560, %559 : vector<8x32xf32>
    %562 = arith.divf %560, %561 : vector<8x32xf32>
    %563 = vector.extract_strided_slice %556 {offsets = [0, 32], sizes = [8, 32], strides = [1, 1]} : vector<8x128xf32> to vector<8x32xf32>
    %564 = arith.negf %563 : vector<8x32xf32>
    %565 = math.exp %564 : vector<8x32xf32>
    %cst_258 = arith.constant 1.000000e+00 : f32
    %566 = vector.broadcast %cst_258 : f32 to vector<8x32xf32>
    %567 = arith.addf %566, %565 : vector<8x32xf32>
    %568 = arith.divf %566, %567 : vector<8x32xf32>
    %569 = vector.extract_strided_slice %556 {offsets = [0, 64], sizes = [8, 32], strides = [1, 1]} : vector<8x128xf32> to vector<8x32xf32>
    %570 = math.tanh %569 : vector<8x32xf32>
    %571 = vector.extract_strided_slice %556 {offsets = [0, 96], sizes = [8, 32], strides = [1, 1]} : vector<8x128xf32> to vector<8x32xf32>
    %572 = arith.negf %571 : vector<8x32xf32>
    %573 = math.exp %572 : vector<8x32xf32>
    %cst_259 = arith.constant 1.000000e+00 : f32
    %574 = vector.broadcast %cst_259 : f32 to vector<8x32xf32>
    %575 = arith.addf %574, %573 : vector<8x32xf32>
    %576 = arith.divf %574, %575 : vector<8x32xf32>
    %577 = arith.mulf %568, %551 : vector<8x32xf32>
    %578 = arith.mulf %562, %570 : vector<8x32xf32>
    %579 = arith.addf %577, %578 : vector<8x32xf32>
    %580 = math.tanh %579 : vector<8x32xf32>
    %581 = arith.mulf %576, %580 : vector<8x32xf32>
    %c0_260 = arith.constant 0 : index
    %c0_261 = arith.constant 0 : index
    %582 = vector.load %arg9[%c0_260, %c0_261] : memref<8x32xf32, #tpu.memory_space<vmem>>, vector<8x32xf32>
    tpu.vector_store %arg9[%c0_260, %c0_261], %581 {strides = array<i32>} : memref<8x32xf32, #tpu.memory_space<vmem>>, vector<8x32xf32>,
    %c0_262 = arith.constant 0 : index
    %c0_263 = arith.constant 0 : index
    %583 = vector.load %arg10[%c0_262, %c0_263] : memref<8x32xf32, #tpu.memory_space<vmem>>, vector<8x32xf32>
    tpu.vector_store %arg10[%c0_262, %c0_263], %579 {strides = array<i32>} : memref<8x32xf32, #tpu.memory_space<vmem>>, vector<8x32xf32>,
    %584 = arith.index_cast %c5_i32_248 : i32 to index
    %c0_264 = arith.constant 0 : index
    %c0_265 = arith.constant 0 : index
    %585 = vector.load %arg8[%584, %c0_264, %c0_265] : memref<8x8x32xf32, #tpu.memory_space<vmem>>, vector<1x8x32xf32>
    %586 = vector.shape_cast %585 : vector<1x8x32xf32> to vector<8x32xf32>
    %587 = vector.shape_cast %581 : vector<8x32xf32> to vector<1x8x32xf32>
    tpu.vector_store %arg8[%584, %c0_264, %c0_265], %587 {strides = array<i32>} : memref<8x8x32xf32, #tpu.memory_space<vmem>>, vector<1x8x32xf32>,
    %c6_i32_266 = arith.constant 6 : i32
    %588 = arith.index_cast %c6_i32_266 : i32 to index
    %c0_267 = arith.constant 0 : index
    %c0_268 = arith.constant 0 : index
    %589 = vector.load %arg11[%588, %c0_267, %c0_268] : memref<8x8x32xf32, #tpu.memory_space<vmem>>, vector<1x8x32xf32>
    %590 = vector.shape_cast %589 : vector<1x8x32xf32> to vector<8x32xf32>
    %c0_269 = arith.constant 0 : index
    %c0_270 = arith.constant 0 : index
    %591 = vector.load %arg9[%c0_269, %c0_270] : memref<8x32xf32, #tpu.memory_space<vmem>>, vector<8x32xf32>
    %c0_271 = arith.constant 0 : index
    %c0_272 = arith.constant 0 : index
    %592 = vector.load %arg10[%c0_271, %c0_272] : memref<8x32xf32, #tpu.memory_space<vmem>>, vector<8x32xf32>
    %cst_273 = arith.constant dense<0.000000e+00> : vector<8x128xf32>
    %593 = tpu.matmul %590, %3, %cst_273 {dimension_numbers = #tpu.dot_dimension_numbers<[1], [0], [0], [1], [0, 0, 1, 1], [], []>} : vector<8x32xf32>, vector<32x128xf32>, vector<8x128xf32> -> vector<8x128xf32>
    %cst_274 = arith.constant dense<0.000000e+00> : vector<8x128xf32>
    %594 = tpu.matmul %591, %4, %cst_274 {dimension_numbers = #tpu.dot_dimension_numbers<[1], [0], [0], [1], [0, 0, 1, 1], [], []>} : vector<8x32xf32>, vector<32x128xf32>, vector<8x128xf32> -> vector<8x128xf32>
    %595 = arith.addf %593, %594 : vector<8x128xf32>
    %596 = vector.broadcast %5 : vector<1x128xf32> to vector<8x128xf32>
    %597 = arith.addf %595, %596 : vector<8x128xf32>
    %598 = vector.extract_strided_slice %597 {offsets = [0, 0], sizes = [8, 32], strides = [1, 1]} : vector<8x128xf32> to vector<8x32xf32>
    %599 = arith.negf %598 : vector<8x32xf32>
    %600 = math.exp %599 : vector<8x32xf32>
    %cst_275 = arith.constant 1.000000e+00 : f32
    %601 = vector.broadcast %cst_275 : f32 to vector<8x32xf32>
    %602 = arith.addf %601, %600 : vector<8x32xf32>
    %603 = arith.divf %601, %602 : vector<8x32xf32>
    %604 = vector.extract_strided_slice %597 {offsets = [0, 32], sizes = [8, 32], strides = [1, 1]} : vector<8x128xf32> to vector<8x32xf32>
    %605 = arith.negf %604 : vector<8x32xf32>
    %606 = math.exp %605 : vector<8x32xf32>
    %cst_276 = arith.constant 1.000000e+00 : f32
    %607 = vector.broadcast %cst_276 : f32 to vector<8x32xf32>
    %608 = arith.addf %607, %606 : vector<8x32xf32>
    %609 = arith.divf %607, %608 : vector<8x32xf32>
    %610 = vector.extract_strided_slice %597 {offsets = [0, 64], sizes = [8, 32], strides = [1, 1]} : vector<8x128xf32> to vector<8x32xf32>
    %611 = math.tanh %610 : vector<8x32xf32>
    %612 = vector.extract_strided_slice %597 {offsets = [0, 96], sizes = [8, 32], strides = [1, 1]} : vector<8x128xf32> to vector<8x32xf32>
    %613 = arith.negf %612 : vector<8x32xf32>
    %614 = math.exp %613 : vector<8x32xf32>
    %cst_277 = arith.constant 1.000000e+00 : f32
    %615 = vector.broadcast %cst_277 : f32 to vector<8x32xf32>
    %616 = arith.addf %615, %614 : vector<8x32xf32>
    %617 = arith.divf %615, %616 : vector<8x32xf32>
    %618 = arith.mulf %609, %592 : vector<8x32xf32>
    %619 = arith.mulf %603, %611 : vector<8x32xf32>
    %620 = arith.addf %618, %619 : vector<8x32xf32>
    %621 = math.tanh %620 : vector<8x32xf32>
    %622 = arith.mulf %617, %621 : vector<8x32xf32>
    %c0_278 = arith.constant 0 : index
    %c0_279 = arith.constant 0 : index
    %623 = vector.load %arg9[%c0_278, %c0_279] : memref<8x32xf32, #tpu.memory_space<vmem>>, vector<8x32xf32>
    tpu.vector_store %arg9[%c0_278, %c0_279], %622 {strides = array<i32>} : memref<8x32xf32, #tpu.memory_space<vmem>>, vector<8x32xf32>,
    %c0_280 = arith.constant 0 : index
    %c0_281 = arith.constant 0 : index
    %624 = vector.load %arg10[%c0_280, %c0_281] : memref<8x32xf32, #tpu.memory_space<vmem>>, vector<8x32xf32>
    tpu.vector_store %arg10[%c0_280, %c0_281], %620 {strides = array<i32>} : memref<8x32xf32, #tpu.memory_space<vmem>>, vector<8x32xf32>,
    %625 = arith.index_cast %c6_i32_266 : i32 to index
    %c0_282 = arith.constant 0 : index
    %c0_283 = arith.constant 0 : index
    %626 = vector.load %arg8[%625, %c0_282, %c0_283] : memref<8x8x32xf32, #tpu.memory_space<vmem>>, vector<1x8x32xf32>
    %627 = vector.shape_cast %626 : vector<1x8x32xf32> to vector<8x32xf32>
    %628 = vector.shape_cast %622 : vector<8x32xf32> to vector<1x8x32xf32>
    tpu.vector_store %arg8[%625, %c0_282, %c0_283], %628 {strides = array<i32>} : memref<8x8x32xf32, #tpu.memory_space<vmem>>, vector<1x8x32xf32>,
    %c7_i32_284 = arith.constant 7 : i32
    %629 = arith.index_cast %c7_i32_284 : i32 to index
    %c0_285 = arith.constant 0 : index
    %c0_286 = arith.constant 0 : index
    %630 = vector.load %arg11[%629, %c0_285, %c0_286] : memref<8x8x32xf32, #tpu.memory_space<vmem>>, vector<1x8x32xf32>
    %631 = vector.shape_cast %630 : vector<1x8x32xf32> to vector<8x32xf32>
    %c0_287 = arith.constant 0 : index
    %c0_288 = arith.constant 0 : index
    %632 = vector.load %arg9[%c0_287, %c0_288] : memref<8x32xf32, #tpu.memory_space<vmem>>, vector<8x32xf32>
    %c0_289 = arith.constant 0 : index
    %c0_290 = arith.constant 0 : index
    %633 = vector.load %arg10[%c0_289, %c0_290] : memref<8x32xf32, #tpu.memory_space<vmem>>, vector<8x32xf32>
    %cst_291 = arith.constant dense<0.000000e+00> : vector<8x128xf32>
    %634 = tpu.matmul %631, %3, %cst_291 {dimension_numbers = #tpu.dot_dimension_numbers<[1], [0], [0], [1], [0, 0, 1, 1], [], []>} : vector<8x32xf32>, vector<32x128xf32>, vector<8x128xf32> -> vector<8x128xf32>
    %cst_292 = arith.constant dense<0.000000e+00> : vector<8x128xf32>
    %635 = tpu.matmul %632, %4, %cst_292 {dimension_numbers = #tpu.dot_dimension_numbers<[1], [0], [0], [1], [0, 0, 1, 1], [], []>} : vector<8x32xf32>, vector<32x128xf32>, vector<8x128xf32> -> vector<8x128xf32>
    %636 = arith.addf %634, %635 : vector<8x128xf32>
    %637 = vector.broadcast %5 : vector<1x128xf32> to vector<8x128xf32>
    %638 = arith.addf %636, %637 : vector<8x128xf32>
    %639 = vector.extract_strided_slice %638 {offsets = [0, 0], sizes = [8, 32], strides = [1, 1]} : vector<8x128xf32> to vector<8x32xf32>
    %640 = arith.negf %639 : vector<8x32xf32>
    %641 = math.exp %640 : vector<8x32xf32>
    %cst_293 = arith.constant 1.000000e+00 : f32
    %642 = vector.broadcast %cst_293 : f32 to vector<8x32xf32>
    %643 = arith.addf %642, %641 : vector<8x32xf32>
    %644 = arith.divf %642, %643 : vector<8x32xf32>
    %645 = vector.extract_strided_slice %638 {offsets = [0, 32], sizes = [8, 32], strides = [1, 1]} : vector<8x128xf32> to vector<8x32xf32>
    %646 = arith.negf %645 : vector<8x32xf32>
    %647 = math.exp %646 : vector<8x32xf32>
    %cst_294 = arith.constant 1.000000e+00 : f32
    %648 = vector.broadcast %cst_294 : f32 to vector<8x32xf32>
    %649 = arith.addf %648, %647 : vector<8x32xf32>
    %650 = arith.divf %648, %649 : vector<8x32xf32>
    %651 = vector.extract_strided_slice %638 {offsets = [0, 64], sizes = [8, 32], strides = [1, 1]} : vector<8x128xf32> to vector<8x32xf32>
    %652 = math.tanh %651 : vector<8x32xf32>
    %653 = vector.extract_strided_slice %638 {offsets = [0, 96], sizes = [8, 32], strides = [1, 1]} : vector<8x128xf32> to vector<8x32xf32>
    %654 = arith.negf %653 : vector<8x32xf32>
    %655 = math.exp %654 : vector<8x32xf32>
    %cst_295 = arith.constant 1.000000e+00 : f32
    %656 = vector.broadcast %cst_295 : f32 to vector<8x32xf32>
    %657 = arith.addf %656, %655 : vector<8x32xf32>
    %658 = arith.divf %656, %657 : vector<8x32xf32>
    %659 = arith.mulf %650, %633 : vector<8x32xf32>
    %660 = arith.mulf %644, %652 : vector<8x32xf32>
    %661 = arith.addf %659, %660 : vector<8x32xf32>
    %662 = math.tanh %661 : vector<8x32xf32>
    %663 = arith.mulf %658, %662 : vector<8x32xf32>
    %c0_296 = arith.constant 0 : index
    %c0_297 = arith.constant 0 : index
    %664 = vector.load %arg9[%c0_296, %c0_297] : memref<8x32xf32, #tpu.memory_space<vmem>>, vector<8x32xf32>
    tpu.vector_store %arg9[%c0_296, %c0_297], %663 {strides = array<i32>} : memref<8x32xf32, #tpu.memory_space<vmem>>, vector<8x32xf32>,
    %c0_298 = arith.constant 0 : index
    %c0_299 = arith.constant 0 : index
    %665 = vector.load %arg10[%c0_298, %c0_299] : memref<8x32xf32, #tpu.memory_space<vmem>>, vector<8x32xf32>
    tpu.vector_store %arg10[%c0_298, %c0_299], %661 {strides = array<i32>} : memref<8x32xf32, #tpu.memory_space<vmem>>, vector<8x32xf32>,
    %666 = arith.index_cast %c7_i32_284 : i32 to index
    %c0_300 = arith.constant 0 : index
    %c0_301 = arith.constant 0 : index
    %667 = vector.load %arg8[%666, %c0_300, %c0_301] : memref<8x8x32xf32, #tpu.memory_space<vmem>>, vector<1x8x32xf32>
    %668 = vector.shape_cast %667 : vector<1x8x32xf32> to vector<8x32xf32>
    %669 = vector.shape_cast %663 : vector<8x32xf32> to vector<1x8x32xf32>
    tpu.vector_store %arg8[%666, %c0_300, %c0_301], %669 {strides = array<i32>} : memref<8x8x32xf32, #tpu.memory_space<vmem>>, vector<1x8x32xf32>,
    %c8_i32_302 = arith.constant 8 : i32
    return
  }
  func.func @transform_0(%arg0: i32) -> (i32, i32, i32) {
    %c0_i32 = arith.constant 0 : i32
    %c0_i32_0 = arith.constant 0 : i32
    %c0_i32_1 = arith.constant 0 : i32
    %c0_i32_2 = arith.constant 0 : i32
    return %c0_i32, %c0_i32_0, %c0_i32_1 : i32, i32, i32
  }
  func.func @transform_1(%arg0: i32) -> (i32, i32) {
    %c0_i32 = arith.constant 0 : i32
    %c0_i32_0 = arith.constant 0 : i32
    %c0_i32_1 = arith.constant 0 : i32
    return %c0_i32, %c0_i32_0 : i32, i32
  }
  func.func @transform_2(%arg0: i32) -> (i32, i32) {
    %c0_i32 = arith.constant 0 : i32
    %c0_i32_0 = arith.constant 0 : i32
    %c0_i32_1 = arith.constant 0 : i32
    return %c0_i32, %c0_i32_0 : i32, i32
  }
  func.func @transform_3(%arg0: i32) -> (i32, i32) {
    %c0_i32 = arith.constant 0 : i32
    %c0_i32_0 = arith.constant 0 : i32
    %c0_i32_1 = arith.constant 0 : i32
    return %c0_i32, %c0_i32_0 : i32, i32
  }
  func.func @transform_4(%arg0: i32) -> (i32, i32) {
    %c0_i32 = arith.constant 0 : i32
    %c0_i32_0 = arith.constant 0 : i32
    %c0_i32_1 = arith.constant 0 : i32
    return %c0_i32, %c0_i32_0 : i32, i32
  }
  func.func @transform_5(%arg0: i32) -> (i32, i32) {
    %c0_i32 = arith.constant 0 : i32
    %c0_i32_0 = arith.constant 0 : i32
    %c0_i32_1 = arith.constant 0 : i32
    return %c0_i32, %c0_i32_0 : i32, i32
  }
  func.func @transform_6(%arg0: i32) -> (i32, i32) {
    %c0_i32 = arith.constant 0 : i32
    %c0_i32_0 = arith.constant 0 : i32
    %c0_i32_1 = arith.constant 0 : i32
    return %c0_i32, %c0_i32_0 : i32, i32
  }
  func.func @transform_7(%arg0: i32) -> (i32, i32, i32) {
    %c0_i32 = arith.constant 0 : i32
    %c0_i32_0 = arith.constant 0 : i32
    %c0_i32_1 = arith.constant 0 : i32
    %c0_i32_2 = arith.constant 0 : i32
    return %c0_i32, %c0_i32_0, %c0_i32_1 : i32, i32, i32
  }
}

</mosaic_0001>

<llo_original>
// kernel: seq_lstm_forward.1
$region0: #{seq_lstm_forward.1}
  #allocation0 [shape = 'u32[]', space=smem, size = 0x4, offset = 0x4, fixed_abs, tag = 'smem constant byte address 0x4 - core index']
  #allocation1 [shape = 'u32[72,128]{1,0:T(1,128)}', space=vmem, size = 0x9000, scoped, tag = 'internal scratch']
  #allocation2 [shape = 'f32[8,32]{1,0:T(8,128)}', space=vmem, size = 0x1000, scoped, tag = 'scratch operand']
  #allocation3 [shape = 'f32[8,32]{1,0:T(8,128)}', space=vmem, size = 0x1000, scoped, tag = 'scratch operand']
  #allocation4 [shape = 'f32[8,8,32]{2,1,0:T(8,128)}', space=vmem, size = 0x8000, scoped, tag = 'scratch operand']
  %s0 = inlined_call_operand.vmem [shape: f32[8,8,32], index: 0, kind: input, shape index: {}]
  %s1 = inlined_call_operand.vmem [shape: f32[32,128], index: 1, kind: input, shape index: {}]
  %s2 = inlined_call_operand.vmem [shape: f32[32,128], index: 2, kind: input, shape index: {}]
  %s3 = inlined_call_operand.vmem [shape: f32[1,128], index: 3, kind: input, shape index: {}]
  %s4 = inlined_call_operand.vmem [shape: f32[32,128], index: 4, kind: input, shape index: {}]
  %s5 = inlined_call_operand.hbm [shape: f32[32,128], index: 5, kind: input, shape index: {}]
  %s6 = inlined_call_operand.vmem [shape: f32[1,128], index: 6, kind: input, shape index: {}]
  %s7 = inlined_call_operand.vmem [shape: f32[8,8,32], index: 7, kind: output, shape index: {}]
  %s8 = sld [smem:[#allocation0]]
  $region42: #{seq_lstm_forward.1} parent=0
    _
  %s10 = ssub.s32 1, %s8
  %s11 = scalar_select 0, %s10, %s8
  $region1: #{seq_lstm_forward.1} parent=0
    #allocation5 [shape = 'u8[16384]{0}', space=vmem, size = 0x4000, scoped, tag = 'input window, operand 5, single buffered']
    #allocation6 [shape = 's32[1]{0}', space=sflag, size = 0x4, scoped, tag = 'scoped memory for seq_lstm_forward.1']
    %12 = vsyncpa [#allocation6], 0
    // Predicated region
    $region2: #{seq_lstm_forward.1} parent=1 // pred_check
      _
    $region3: #{seq_lstm_forward.1} parent=1 // pred_check_branch
      %14 = sbr.rel (0) target = $region5
    $region4: #{seq_lstm_forward.1} parent=1 // pred_region
      _
    $region5: #{seq_lstm_forward.1} parent=1 // pred_fallthru
      _
    // Predicated region
    $region6: #{seq_lstm_forward.1} parent=1 // pred_check
      _
    $region7: #{seq_lstm_forward.1} parent=1 // pred_check_branch
      %16 = sbr.rel (0) target = $region9
    $region8: #{seq_lstm_forward.1} parent=1 // pred_region
      _
    $region9: #{seq_lstm_forward.1} parent=1 // pred_fallthru
      _
    // Predicated region
    $region10: #{seq_lstm_forward.1} parent=1 // pred_check
      _
    $region11: #{seq_lstm_forward.1} parent=1 // pred_check_branch
      %18 = sbr.rel (0) target = $region13
    $region12: #{seq_lstm_forward.1} parent=1 // pred_region
      _
    $region13: #{seq_lstm_forward.1} parent=1 // pred_fallthru
      _
    // Predicated region
    $region14: #{seq_lstm_forward.1} parent=1 // pred_check
      _
    $region15: #{seq_lstm_forward.1} parent=1 // pred_check_branch
      %20 = sbr.rel (0) target = $region17
    $region16: #{seq_lstm_forward.1} parent=1 // pred_region
      _
    $region17: #{seq_lstm_forward.1} parent=1 // pred_fallthru
      _
    // Predicated region
    $region18: #{seq_lstm_forward.1} parent=1 // pred_check
      _
    $region19: #{seq_lstm_forward.1} parent=1 // pred_check_branch
      %22 = sbr.rel (0) target = $region21
    $region20: #{seq_lstm_forward.1} parent=1 // pred_region
      _
    $region21: #{seq_lstm_forward.1} parent=1 // pred_fallthru
      _
    // Predicated region
    $region22: #{seq_lstm_forward.1} parent=1 // pred_check
      _
    $region23: #{seq_lstm_forward.1} parent=1 // pred_check_branch
      %24 = sbr.rel (0) target = $region25
    $region24: #{seq_lstm_forward.1} parent=1 // pred_region
      %26 = vsyncadd [#allocation6], 0
      %s27 = sshll.u32 %s5, 4
      %s28 = int_to_ptr.hbm [resolvable:$true] %s27
      %s29 = sshll.u32 [#allocation5], 4
      %s30 = int_to_ptr.vmem [resolvable:$true] %s29
      %35 = dma.hbm_to_vmem [thread:$0]  %s28, 512, %s30, [#allocation6], 128, 128, 8
    $region25: #{seq_lstm_forward.1} parent=1 // pred_fallthru
      _
    // Predicated region
    $region26: #{seq_lstm_forward.1} parent=1 // pred_check
      _
    $region27: #{seq_lstm_forward.1} parent=1 // pred_check_branch
      %37 = sbr.rel (0) target = $region29
    $region28: #{seq_lstm_forward.1} parent=1 // pred_region
      _
    $region29: #{seq_lstm_forward.1} parent=1 // pred_fallthru
      _
    // Predicated region
    $region30: #{seq_lstm_forward.1} parent=1 // pred_check
      _
    $region31: #{seq_lstm_forward.1} parent=1 // pred_check_branch
      %39 = sbr.rel (0) target = $region33
    $region32: #{seq_lstm_forward.1} parent=1 // pred_region
      %41 = dma.done [#allocation6], 512
    $region33: #{seq_lstm_forward.1} parent=1 // pred_fallthru
      _
    %v42 = vld [vmem:[%s1] sm:$0xff]
    %v43 = vld [vmem:[%s1 + $0x8] sm:$0xff]
    %v44 = vld [vmem:[%s1 + $0x10] sm:$0xff]
    %v45 = vld [vmem:[%s1 + $0x18] sm:$0xff]
    %v46 = vld [vmem:[%s2] sm:$0xff]
    %v47 = vld [vmem:[%s2 + $0x8] sm:$0xff]
    %v48 = vld [vmem:[%s2 + $0x10] sm:$0xff]
    %v49 = vld [vmem:[%s2 + $0x18] sm:$0xff]
    %v50 = vld [vmem:[%s3] sm:$0x1]
    %v51 = vld [vmem:[%s4] sm:$0xff]
    %v52 = vld [vmem:[%s4 + $0x8] sm:$0xff]
    %v53 = vld [vmem:[%s4 + $0x10] sm:$0xff]
    %v54 = vld [vmem:[%s4 + $0x18] sm:$0xff]
    %v55 = vld [vmem:[#allocation5] sm:$0xff]
    %v56 = vld [vmem:[#allocation5 + $0x8] sm:$0xff]
    %v57 = vld [vmem:[#allocation5 + $0x10] sm:$0xff]
    %v58 = vld [vmem:[#allocation5 + $0x18] sm:$0xff]
    %v59 = vld [vmem:[%s6] sm:$0x1]
    %vm60 = vcmask 261120
    %61 = vst.msk [vmem:[#allocation2] sm:$0xff] %vm60, 0.0
    %62 = vst.msk [vmem:[#allocation3] sm:$0xff] %vm60, 0.0
    %v63 = vld [vmem:[%s0] sm:$0xff]
    %v64 = vld [vmem:[#allocation2] sm:$0xff]
    %v65 = vld [vmem:[#allocation3] sm:$0xff]
    %v67 = vsel %vm60, %v64, 0
    %69 = vmatpush.msra.mxu0 0.0
    %70 = vmatpush.msra.mxu0 0.0
    %71 = vmatpush.msra.mxu0 0.0
    %72 = vmatpush.msra.mxu0 0.0
    %73 = vmatpush.msra.mxu0 0.0
    %74 = vmatpush.msra.mxu0 0.0
    %75 = vmatpush.msra.mxu0 0.0
    %76 = vmatpush.msra.mxu0 0.0
    %77 = vmatpush.msra.mxu0 0.0
    %78 = vmatpush.msra.mxu0 0.0
    %79 = vmatpush.msra.mxu0 0.0
    %80 = vmatpush.msra.mxu0 0.0
    %81 = vmatpush.msra.mxu0 %v49
    %82 = vmatpush.msra.mxu0 %v48
    %83 = vmatpush.msra.mxu0 %v47
    %84 = vmatpush.msra.mxu0 %v46
    %85 = vmatmul.f32.gmra.mxu0 %v67
    %v86 = vpop.f32.mrf.mxu0
    %v87 = vadd.f32 0.0, %v86
    %88 = vdwg.mxu0
    %v90 = vsel %vm60, %v63, 0
    %92 = vmatpush.msra.mxu0 0.0
    %93 = vmatpush.msra.mxu0 0.0
    %94 = vmatpush.msra.mxu0 0.0
    %95 = vmatpush.msra.mxu0 0.0
    %96 = vmatpush.msra.mxu0 0.0
    %97 = vmatpush.msra.mxu0 0.0
    %98 = vmatpush.msra.mxu0 0.0
    %99 = vmatpush.msra.mxu0 0.0
    %100 = vmatpush.msra.mxu0 0.0
    %101 = vmatpush.msra.mxu0 0.0
    %102 = vmatpush.msra.mxu0 0.0
    %103 = vmatpush.msra.mxu0 0.0
    %104 = vmatpush.msra.mxu0 %v45
    %105 = vmatpush.msra.mxu0 %v44
    %106 = vmatpush.msra.mxu0 %v43
    %107 = vmatpush.msra.mxu0 %v42
    %108 = vmatmul.f32.gmra.mxu0 %v90
    %v109 = vpop.f32.mrf.mxu0
    %v110 = vadd.f32 %v87, %v109
    %111 = vdwg.mxu0
    %v113 = vperm.slane %v50, 0
    %v115 = vadd.f32 %v110, %v113
    %v116 = vxor.u32 %v115, 2147483648
    %v117 = vmul.f32 %v116, 1.442695
    %v118 = vpow.pop %v117
    %v119 = vadd.f32 %v118, 1.0
    %v120 = vrcp.pop %v119
    %v121 = vmul.f32 %v119, %v120
    %v122 = vsub.f32 1.0, %v121
    %v123 = vmul.f32 %v120, %v122
    %v124 = vadd.f32 %v120, %v123
    %vm125 = vweird.f32 %v119
    %vm126 = vweird.f32 %v120
    %vm127 = vmor %vm125, %vm126
    %v128 = vsel %vm127, %v120, %v124
    %v129 = vand.u32 2147483647, %v119
    %vm130 = vcmp.eq.f32.partialorder %v129, 8.507059e+37
    %v131 = vand.u32 %v119, 2147483648
    %v132 = vor.u32 1.1754944e-38, %v131
    %v133 = vsel %vm130, %v132, %v128
    %v134 = vmul.f32 1.0, %v133
    %v135 = vtanh.pop %v115
    %137 = vrot.lane.b32.xlu0 %v65, 32
    %v138 = vpop.permute.xlu0 %137
    %v140 = vmul.f32 %v134, %v138
    %142 = vrot.lane.b32.xlu0 %v135, 64
    %v143 = vpop.permute.xlu0 %142
    %v145 = vmul.f32 %v134, %v143
    %147 = vrot.lane.b32.xlu0 %v145, 32
    %v148 = vpop.permute.xlu0 %147
    %v150 = vadd.f32 %v140, %v148
    %v151 = vtanh.pop %v150
    %153 = vrot.lane.b32.xlu0 %v151, 64
    %v154 = vpop.permute.xlu0 %153
    %v156 = vmul.f32 %v134, %v154
    %158 = vrot.lane.b32.xlu0 %v156, 32
    %v159 = vpop.permute.xlu0 %158
    %161 = vst.msk [vmem:[#allocation2] sm:$0xff] %vm60, %v159
    %163 = vrot.lane.b32.xlu0 %v150, 96
    %v164 = vpop.permute.xlu0 %163
    %166 = vst.msk [vmem:[#allocation3] sm:$0xff] %vm60, %v164
    %167 = vst.msk [vmem:[#allocation4] sm:$0xff] %vm60, %v159
    %s168 = scalar_lea.vmem %s0, 8
    %v169 = vld [vmem:[%s168] sm:$0xff]
    %v170 = vld [vmem:[#allocation2] sm:$0xff]
    %v171 = vld [vmem:[#allocation3] sm:$0xff]
    %v173 = vsel %vm60, %v170, 0
    %175 = vmatpush.msra.mxu0 0.0
    %176 = vmatpush.msra.mxu0 0.0
    %177 = vmatpush.msra.mxu0 0.0
    %178 = vmatpush.msra.mxu0 0.0
    %179 = vmatpush.msra.mxu0 0.0
    %180 = vmatpush.msra.mxu0 0.0
    %181 = vmatpush.msra.mxu0 0.0
    %182 = vmatpush.msra.mxu0 0.0
    %183 = vmatpush.msra.mxu0 0.0
    %184 = vmatpush.msra.mxu0 0.0
    %185 = vmatpush.msra.mxu0 0.0
    %186 = vmatpush.msra.mxu0 0.0
    %187 = vmatpush.msra.mxu0 %v49
    %188 = vmatpush.msra.mxu0 %v48
    %189 = vmatpush.msra.mxu0 %v47
    %190 = vmatpush.msra.mxu0 %v46
    %191 = vmatmul.f32.gmra.mxu0 %v173
    %v192 = vpop.f32.mrf.mxu0
    %v193 = vadd.f32 0.0, %v192
    %194 = vdwg.mxu0
    %v196 = vsel %vm60, %v169, 0
    %198 = vmatpush.msra.mxu0 0.0
    %199 = vmatpush.msra.mxu0 0.0
    %200 = vmatpush.msra.mxu0 0.0
    %201 = vmatpush.msra.mxu0 0.0
    %202 = vmatpush.msra.mxu0 0.0
    %203 = vmatpush.msra.mxu0 0.0
    %204 = vmatpush.msra.mxu0 0.0
    %205 = vmatpush.msra.mxu0 0.0
    %206 = vmatpush.msra.mxu0 0.0
    %207 = vmatpush.msra.mxu0 0.0
    %208 = vmatpush.msra.mxu0 0.0
    %209 = vmatpush.msra.mxu0 0.0
    %210 = vmatpush.msra.mxu0 %v45
    %211 = vmatpush.msra.mxu0 %v44
    %212 = vmatpush.msra.mxu0 %v43
    %213 = vmatpush.msra.mxu0 %v42
    %214 = vmatmul.f32.gmra.mxu0 %v196
    %v215 = vpop.f32.mrf.mxu0
    %v216 = vadd.f32 %v193, %v215
    %217 = vdwg.mxu0
    %v218 = vadd.f32 %v216, %v113
    %v219 = vxor.u32 %v218, 2147483648
    %v220 = vmul.f32 %v219, 1.442695
    %v221 = vpow.pop %v220
    %v222 = vadd.f32 %v221, 1.0
    %v223 = vrcp.pop %v222
    %v224 = vmul.f32 %v222, %v223
    %v225 = vsub.f32 1.0, %v224
    %v226 = vmul.f32 %v223, %v225
    %v227 = vadd.f32 %v223, %v226
    %vm228 = vweird.f32 %v222
    %vm229 = vweird.f32 %v223
    %vm230 = vmor %vm228, %vm229
    %v231 = vsel %vm230, %v223, %v227
    %v232 = vand.u32 2147483647, %v222
    %vm233 = vcmp.eq.f32.partialorder %v232, 8.507059e+37
    %v234 = vand.u32 %v222, 2147483648
    %v235 = vor.u32 1.1754944e-38, %v234
    %v236 = vsel %vm233, %v235, %v231
    %v237 = vmul.f32 1.0, %v236
    %v238 = vtanh.pop %v218
    %240 = vrot.lane.b32.xlu0 %v171, 32
    %v241 = vpop.permute.xlu0 %240
    %v243 = vmul.f32 %v237, %v241
    %245 = vrot.lane.b32.xlu0 %v238, 64
    %v246 = vpop.permute.xlu0 %245
    %v248 = vmul.f32 %v237, %v246
    %250 = vrot.lane.b32.xlu0 %v248, 32
    %v251 = vpop.permute.xlu0 %250
    %v253 = vadd.f32 %v243, %v251
    %v254 = vtanh.pop %v253
    %256 = vrot.lane.b32.xlu0 %v254, 64
    %v257 = vpop.permute.xlu0 %256
    %v259 = vmul.f32 %v237, %v257
    %261 = vrot.lane.b32.xlu0 %v259, 32
    %v262 = vpop.permute.xlu0 %261
    %264 = vst.msk [vmem:[#allocation2] sm:$0xff] %vm60, %v262
    %266 = vrot.lane.b32.xlu0 %v253, 96
    %v267 = vpop.permute.xlu0 %266
    %269 = vst.msk [vmem:[#allocation3] sm:$0xff] %vm60, %v267
    %s270 = scalar_lea.vmem [#allocation4], 8
    %271 = vst.msk [vmem:[%s270] sm:$0xff] %vm60, %v262
    %s272 = scalar_lea.vmem %s0, 16
    %v273 = vld [vmem:[%s272] sm:$0xff]
    %v274 = vld [vmem:[#allocation2] sm:$0xff]
    %v275 = vld [vmem:[#allocation3] sm:$0xff]
    %v277 = vsel %vm60, %v274, 0
    %279 = vmatpush.msra.mxu0 0.0
    %280 = vmatpush.msra.mxu0 0.0
    %281 = vmatpush.msra.mxu0 0.0
    %282 = vmatpush.msra.mxu0 0.0
    %283 = vmatpush.msra.mxu0 0.0
    %284 = vmatpush.msra.mxu0 0.0
    %285 = vmatpush.msra.mxu0 0.0
    %286 = vmatpush.msra.mxu0 0.0
    %287 = vmatpush.msra.mxu0 0.0
    %288 = vmatpush.msra.mxu0 0.0
    %289 = vmatpush.msra.mxu0 0.0
    %290 = vmatpush.msra.mxu0 0.0
    %291 = vmatpush.msra.mxu0 %v49
    %292 = vmatpush.msra.mxu0 %v48
    %293 = vmatpush.msra.mxu0 %v47
    %294 = vmatpush.msra.mxu0 %v46
    %295 = vmatmul.f32.gmra.mxu0 %v277
    %v296 = vpop.f32.mrf.mxu0
    %v297 = vadd.f32 0.0, %v296
    %298 = vdwg.mxu0
    %v300 = vsel %vm60, %v273, 0
    %302 = vmatpush.msra.mxu0 0.0
    %303 = vmatpush.msra.mxu0 0.0
    %304 = vmatpush.msra.mxu0 0.0
    %305 = vmatpush.msra.mxu0 0.0
    %306 = vmatpush.msra.mxu0 0.0
    %307 = vmatpush.msra.mxu0 0.0
    %308 = vmatpush.msra.mxu0 0.0
    %309 = vmatpush.msra.mxu0 0.0
    %310 = vmatpush.msra.mxu0 0.0
    %311 = vmatpush.msra.mxu0 0.0
    %312 = vmatpush.msra.mxu0 0.0
    %313 = vmatpush.msra.mxu0 0.0
    %314 = vmatpush.msra.mxu0 %v45
    %315 = vmatpush.msra.mxu0 %v44
    %316 = vmatpush.msra.mxu0 %v43
    %317 = vmatpush.msra.mxu0 %v42
    %318 = vmatmul.f32.gmra.mxu0 %v300
    %v319 = vpop.f32.mrf.mxu0
    %v320 = vadd.f32 %v297, %v319
    %321 = vdwg.mxu0
    %v322 = vadd.f32 %v320, %v113
    %v323 = vxor.u32 %v322, 2147483648
    %v324 = vmul.f32 %v323, 1.442695
    %v325 = vpow.pop %v324
    %v326 = vadd.f32 %v325, 1.0
    %v327 = vrcp.pop %v326
    %v328 = vmul.f32 %v326, %v327
    %v329 = vsub.f32 1.0, %v328
    %v330 = vmul.f32 %v327, %v329
    %v331 = vadd.f32 %v327, %v330
    %vm332 = vweird.f32 %v326
    %vm333 = vweird.f32 %v327
    %vm334 = vmor %vm332, %vm333
    %v335 = vsel %vm334, %v327, %v331
    %v336 = vand.u32 2147483647, %v326
    %vm337 = vcmp.eq.f32.partialorder %v336, 8.507059e+37
    %v338 = vand.u32 %v326, 2147483648
    %v339 = vor.u32 1.1754944e-38, %v338
    %v340 = vsel %vm337, %v339, %v335
    %v341 = vmul.f32 1.0, %v340
    %v342 = vtanh.pop %v322
    %344 = vrot.lane.b32.xlu0 %v275, 32
    %v345 = vpop.permute.xlu0 %344
    %v347 = vmul.f32 %v341, %v345
    %349 = vrot.lane.b32.xlu0 %v342, 64
    %v350 = vpop.permute.xlu0 %349
    %v352 = vmul.f32 %v341, %v350
    %354 = vrot.lane.b32.xlu0 %v352, 32
    %v355 = vpop.permute.xlu0 %354
    %v357 = vadd.f32 %v347, %v355
    %v358 = vtanh.pop %v357
    %360 = vrot.lane.b32.xlu0 %v358, 64
    %v361 = vpop.permute.xlu0 %360
    %v363 = vmul.f32 %v341, %v361
    %365 = vrot.lane.b32.xlu0 %v363, 32
    %v366 = vpop.permute.xlu0 %365
    %368 = vst.msk [vmem:[#allocation2] sm:$0xff] %vm60, %v366
    %370 = vrot.lane.b32.xlu0 %v357, 96
    %v371 = vpop.permute.xlu0 %370
    %373 = vst.msk [vmem:[#allocation3] sm:$0xff] %vm60, %v371
    %s374 = scalar_lea.vmem [#allocation4], 16
    %375 = vst.msk [vmem:[%s374] sm:$0xff] %vm60, %v366
    %s376 = scalar_lea.vmem %s0, 24
    %v377 = vld [vmem:[%s376] sm:$0xff]
    %v378 = vld [vmem:[#allocation2] sm:$0xff]
    %v379 = vld [vmem:[#allocation3] sm:$0xff]
    %v381 = vsel %vm60, %v378, 0
    %383 = vmatpush.msra.mxu0 0.0
    %384 = vmatpush.msra.mxu0 0.0
    %385 = vmatpush.msra.mxu0 0.0
    %386 = vmatpush.msra.mxu0 0.0
    %387 = vmatpush.msra.mxu0 0.0
    %388 = vmatpush.msra.mxu0 0.0
    %389 = vmatpush.msra.mxu0 0.0
    %390 = vmatpush.msra.mxu0 0.0
    %391 = vmatpush.msra.mxu0 0.0
    %392 = vmatpush.msra.mxu0 0.0
    %393 = vmatpush.msra.mxu0 0.0
    %394 = vmatpush.msra.mxu0 0.0
    %395 = vmatpush.msra.mxu0 %v49
    %396 = vmatpush.msra.mxu0 %v48
    %397 = vmatpush.msra.mxu0 %v47
    %398 = vmatpush.msra.mxu0 %v46
    %399 = vmatmul.f32.gmra.mxu0 %v381
    %v400 = vpop.f32.mrf.mxu0
    %v401 = vadd.f32 0.0, %v400
    %402 = vdwg.mxu0
    %v404 = vsel %vm60, %v377, 0
    %406 = vmatpush.msra.mxu0 0.0
    %407 = vmatpush.msra.mxu0 0.0
    %408 = vmatpush.msra.mxu0 0.0
    %409 = vmatpush.msra.mxu0 0.0
    %410 = vmatpush.msra.mxu0 0.0
    %411 = vmatpush.msra.mxu0 0.0
    %412 = vmatpush.msra.mxu0 0.0
    %413 = vmatpush.msra.mxu0 0.0
    %414 = vmatpush.msra.mxu0 0.0
    %415 = vmatpush.msra.mxu0 0.0
    %416 = vmatpush.msra.mxu0 0.0
    %417 = vmatpush.msra.mxu0 0.0
    %418 = vmatpush.msra.mxu0 %v45
    %419 = vmatpush.msra.mxu0 %v44
    %420 = vmatpush.msra.mxu0 %v43
    %421 = vmatpush.msra.mxu0 %v42
    %422 = vmatmul.f32.gmra.mxu0 %v404
    %v423 = vpop.f32.mrf.mxu0
    %v424 = vadd.f32 %v401, %v423
    %425 = vdwg.mxu0
    %v426 = vadd.f32 %v424, %v113
    %v427 = vxor.u32 %v426, 2147483648
    %v428 = vmul.f32 %v427, 1.442695
    %v429 = vpow.pop %v428
    %v430 = vadd.f32 %v429, 1.0
    %v431 = vrcp.pop %v430
    %v432 = vmul.f32 %v430, %v431
    %v433 = vsub.f32 1.0, %v432
    %v434 = vmul.f32 %v431, %v433
    %v435 = vadd.f32 %v431, %v434
    %vm436 = vweird.f32 %v430
    %vm437 = vweird.f32 %v431
    %vm438 = vmor %vm436, %vm437
    %v439 = vsel %vm438, %v431, %v435
    %v440 = vand.u32 2147483647, %v430
    %vm441 = vcmp.eq.f32.partialorder %v440, 8.507059e+37
    %v442 = vand.u32 %v430, 2147483648
    %v443 = vor.u32 1.1754944e-38, %v442
    %v444 = vsel %vm441, %v443, %v439
    %v445 = vmul.f32 1.0, %v444
    %v446 = vtanh.pop %v426
    %448 = vrot.lane.b32.xlu0 %v379, 32
    %v449 = vpop.permute.xlu0 %448
    %v451 = vmul.f32 %v445, %v449
    %453 = vrot.lane.b32.xlu0 %v446, 64
    %v454 = vpop.permute.xlu0 %453
    %v456 = vmul.f32 %v445, %v454
    %458 = vrot.lane.b32.xlu0 %v456, 32
    %v459 = vpop.permute.xlu0 %458
    %v461 = vadd.f32 %v451, %v459
    %v462 = vtanh.pop %v461
    %464 = vrot.lane.b32.xlu0 %v462, 64
    %v465 = vpop.permute.xlu0 %464
    %v467 = vmul.f32 %v445, %v465
    %469 = vrot.lane.b32.xlu0 %v467, 32
    %v470 = vpop.permute.xlu0 %469
    %472 = vst.msk [vmem:[#allocation2] sm:$0xff] %vm60, %v470
    %474 = vrot.lane.b32.xlu0 %v461, 96
    %v475 = vpop.permute.xlu0 %474
    %477 = vst.msk [vmem:[#allocation3] sm:$0xff] %vm60, %v475
    %s478 = scalar_lea.vmem [#allocation4], 24
    %479 = vst.msk [vmem:[%s478] sm:$0xff] %vm60, %v470
    %s480 = scalar_lea.vmem %s0, 32
    %v481 = vld [vmem:[%s480] sm:$0xff]
    %v482 = vld [vmem:[#allocation2] sm:$0xff]
    %v483 = vld [vmem:[#allocation3] sm:$0xff]
    %v485 = vsel %vm60, %v482, 0
    %487 = vmatpush.msra.mxu0 0.0
    %488 = vmatpush.msra.mxu0 0.0
    %489 = vmatpush.msra.mxu0 0.0
    %490 = vmatpush.msra.mxu0 0.0
    %491 = vmatpush.msra.mxu0 0.0
    %492 = vmatpush.msra.mxu0 0.0
    %493 = vmatpush.msra.mxu0 0.0
    %494 = vmatpush.msra.mxu0 0.0
    %495 = vmatpush.msra.mxu0 0.0
    %496 = vmatpush.msra.mxu0 0.0
    %497 = vmatpush.msra.mxu0 0.0
    %498 = vmatpush.msra.mxu0 0.0
    %499 = vmatpush.msra.mxu0 %v49
    %500 = vmatpush.msra.mxu0 %v48
    %501 = vmatpush.msra.mxu0 %v47
    %502 = vmatpush.msra.mxu0 %v46
    %503 = vmatmul.f32.gmra.mxu0 %v485
    %v504 = vpop.f32.mrf.mxu0
    %v505 = vadd.f32 0.0, %v504
    %506 = vdwg.mxu0
    %v508 = vsel %vm60, %v481, 0
    %510 = vmatpush.msra.mxu0 0.0
    %511 = vmatpush.msra.mxu0 0.0
    %512 = vmatpush.msra.mxu0 0.0
    %513 = vmatpush.msra.mxu0 0.0
    %514 = vmatpush.msra.mxu0 0.0
    %515 = vmatpush.msra.mxu0 0.0
    %516 = vmatpush.msra.mxu0 0.0
    %517 = vmatpush.msra.mxu0 0.0
    %518 = vmatpush.msra.mxu0 0.0
    %519 = vmatpush.msra.mxu0 0.0
    %520 = vmatpush.msra.mxu0 0.0
    %521 = vmatpush.msra.mxu0 0.0
    %522 = vmatpush.msra.mxu0 %v45
    %523 = vmatpush.msra.mxu0 %v44
    %524 = vmatpush.msra.mxu0 %v43
    %525 = vmatpush.msra.mxu0 %v42
    %526 = vmatmul.f32.gmra.mxu0 %v508
    %v527 = vpop.f32.mrf.mxu0
    %v528 = vadd.f32 %v505, %v527
    %529 = vdwg.mxu0
    %v530 = vadd.f32 %v528, %v113
    %v531 = vxor.u32 %v530, 2147483648
    %v532 = vmul.f32 %v531, 1.442695
    %v533 = vpow.pop %v532
    %v534 = vadd.f32 %v533, 1.0
    %v535 = vrcp.pop %v534
    %v536 = vmul.f32 %v534, %v535
    %v537 = vsub.f32 1.0, %v536
    %v538 = vmul.f32 %v535, %v537
    %v539 = vadd.f32 %v535, %v538
    %vm540 = vweird.f32 %v534
    %vm541 = vweird.f32 %v535
    %vm542 = vmor %vm540, %vm541
    %v543 = vsel %vm542, %v535, %v539
    %v544 = vand.u32 2147483647, %v534
    %vm545 = vcmp.eq.f32.partialorder %v544, 8.507059e+37
    %v546 = vand.u32 %v534, 2147483648
    %v547 = vor.u32 1.1754944e-38, %v546
    %v548 = vsel %vm545, %v547, %v543
    %v549 = vmul.f32 1.0, %v548
    %v550 = vtanh.pop %v530
    %552 = vrot.lane.b32.xlu0 %v483, 32
    %v553 = vpop.permute.xlu0 %552
    %v555 = vmul.f32 %v549, %v553
    %557 = vrot.lane.b32.xlu0 %v550, 64
    %v558 = vpop.permute.xlu0 %557
    %v560 = vmul.f32 %v549, %v558
    %562 = vrot.lane.b32.xlu0 %v560, 32
    %v563 = vpop.permute.xlu0 %562
    %v565 = vadd.f32 %v555, %v563
    %v566 = vtanh.pop %v565
    %568 = vrot.lane.b32.xlu0 %v566, 64
    %v569 = vpop.permute.xlu0 %568
    %v571 = vmul.f32 %v549, %v569
    %573 = vrot.lane.b32.xlu0 %v571, 32
    %v574 = vpop.permute.xlu0 %573
    %576 = vst.msk [vmem:[#allocation2] sm:$0xff] %vm60, %v574
    %578 = vrot.lane.b32.xlu0 %v565, 96
    %v579 = vpop.permute.xlu0 %578
    %581 = vst.msk [vmem:[#allocation3] sm:$0xff] %vm60, %v579
    %s582 = scalar_lea.vmem [#allocation4], 32
    %583 = vst.msk [vmem:[%s582] sm:$0xff] %vm60, %v574
    %s584 = scalar_lea.vmem %s0, 40
    %v585 = vld [vmem:[%s584] sm:$0xff]
    %v586 = vld [vmem:[#allocation2] sm:$0xff]
    %v587 = vld [vmem:[#allocation3] sm:$0xff]
    %v589 = vsel %vm60, %v586, 0
    %591 = vmatpush.msra.mxu0 0.0
    %592 = vmatpush.msra.mxu0 0.0
    %593 = vmatpush.msra.mxu0 0.0
    %594 = vmatpush.msra.mxu0 0.0
    %595 = vmatpush.msra.mxu0 0.0
    %596 = vmatpush.msra.mxu0 0.0
    %597 = vmatpush.msra.mxu0 0.0
    %598 = vmatpush.msra.mxu0 0.0
    %599 = vmatpush.msra.mxu0 0.0
    %600 = vmatpush.msra.mxu0 0.0
    %601 = vmatpush.msra.mxu0 0.0
    %602 = vmatpush.msra.mxu0 0.0
    %603 = vmatpush.msra.mxu0 %v49
    %604 = vmatpush.msra.mxu0 %v48
    %605 = vmatpush.msra.mxu0 %v47
    %606 = vmatpush.msra.mxu0 %v46
    %607 = vmatmul.f32.gmra.mxu0 %v589
    %v608 = vpop.f32.mrf.mxu0
    %v609 = vadd.f32 0.0, %v608
    %610 = vdwg.mxu0
    %v612 = vsel %vm60, %v585, 0
    %614 = vmatpush.msra.mxu0 0.0
    %615 = vmatpush.msra.mxu0 0.0
    %616 = vmatpush.msra.mxu0 0.0
    %617 = vmatpush.msra.mxu0 0.0
    %618 = vmatpush.msra.mxu0 0.0
    %619 = vmatpush.msra.mxu0 0.0
    %620 = vmatpush.msra.mxu0 0.0
    %621 = vmatpush.msra.mxu0 0.0
    %622 = vmatpush.msra.mxu0 0.0
    %623 = vmatpush.msra.mxu0 0.0
    %624 = vmatpush.msra.mxu0 0.0
    %625 = vmatpush.msra.mxu0 0.0
    %626 = vmatpush.msra.mxu0 %v45
    %627 = vmatpush.msra.mxu0 %v44
    %628 = vmatpush.msra.mxu0 %v43
    %629 = vmatpush.msra.mxu0 %v42
    %630 = vmatmul.f32.gmra.mxu0 %v612
    %v631 = vpop.f32.mrf.mxu0
    %v632 = vadd.f32 %v609, %v631
    %633 = vdwg.mxu0
    %v634 = vadd.f32 %v632, %v113
    %v635 = vxor.u32 %v634, 2147483648
    %v636 = vmul.f32 %v635, 1.442695
    %v637 = vpow.pop %v636
    %v638 = vadd.f32 %v637, 1.0
    %v639 = vrcp.pop %v638
    %v640 = vmul.f32 %v638, %v639
    %v641 = vsub.f32 1.0, %v640
    %v642 = vmul.f32 %v639, %v641
    %v643 = vadd.f32 %v639, %v642
    %vm644 = vweird.f32 %v638
    %vm645 = vweird.f32 %v639
    %vm646 = vmor %vm644, %vm645
    %v647 = vsel %vm646, %v639, %v643
    %v648 = vand.u32 2147483647, %v638
    %vm649 = vcmp.eq.f32.partialorder %v648, 8.507059e+37
    %v650 = vand.u32 %v638, 2147483648
    %v651 = vor.u32 1.1754944e-38, %v650
    %v652 = vsel %vm649, %v651, %v647
    %v653 = vmul.f32 1.0, %v652
    %v654 = vtanh.pop %v634
    %656 = vrot.lane.b32.xlu0 %v587, 32
    %v657 = vpop.permute.xlu0 %656
    %v659 = vmul.f32 %v653, %v657
    %661 = vrot.lane.b32.xlu0 %v654, 64
    %v662 = vpop.permute.xlu0 %661
    %v664 = vmul.f32 %v653, %v662
    %666 = vrot.lane.b32.xlu0 %v664, 32
    %v667 = vpop.permute.xlu0 %666
    %v669 = vadd.f32 %v659, %v667
    %v670 = vtanh.pop %v669
    %672 = vrot.lane.b32.xlu0 %v670, 64
    %v673 = vpop.permute.xlu0 %672
    %v675 = vmul.f32 %v653, %v673
    %677 = vrot.lane.b32.xlu0 %v675, 32
    %v678 = vpop.permute.xlu0 %677
    %680 = vst.msk [vmem:[#allocation2] sm:$0xff] %vm60, %v678
    %682 = vrot.lane.b32.xlu0 %v669, 96
    %v683 = vpop.permute.xlu0 %682
    %685 = vst.msk [vmem:[#allocation3] sm:$0xff] %vm60, %v683
    %s686 = scalar_lea.vmem [#allocation4], 40
    %687 = vst.msk [vmem:[%s686] sm:$0xff] %vm60, %v678
    %s688 = scalar_lea.vmem %s0, 48
    %v689 = vld [vmem:[%s688] sm:$0xff]
    %v690 = vld [vmem:[#allocation2] sm:$0xff]
    %v691 = vld [vmem:[#allocation3] sm:$0xff]
    %v693 = vsel %vm60, %v690, 0
    %695 = vmatpush.msra.mxu0 0.0
    %696 = vmatpush.msra.mxu0 0.0
    %697 = vmatpush.msra.mxu0 0.0
    %698 = vmatpush.msra.mxu0 0.0
    %699 = vmatpush.msra.mxu0 0.0
    %700 = vmatpush.msra.mxu0 0.0
    %701 = vmatpush.msra.mxu0 0.0
    %702 = vmatpush.msra.mxu0 0.0
    %703 = vmatpush.msra.mxu0 0.0
    %704 = vmatpush.msra.mxu0 0.0
    %705 = vmatpush.msra.mxu0 0.0
    %706 = vmatpush.msra.mxu0 0.0
    %707 = vmatpush.msra.mxu0 %v49
    %708 = vmatpush.msra.mxu0 %v48
    %709 = vmatpush.msra.mxu0 %v47
    %710 = vmatpush.msra.mxu0 %v46
    %711 = vmatmul.f32.gmra.mxu0 %v693
    %v712 = vpop.f32.mrf.mxu0
    %v713 = vadd.f32 0.0, %v712
    %714 = vdwg.mxu0
    %v716 = vsel %vm60, %v689, 0
    %718 = vmatpush.msra.mxu0 0.0
    %719 = vmatpush.msra.mxu0 0.0
    %720 = vmatpush.msra.mxu0 0.0
    %721 = vmatpush.msra.mxu0 0.0
    %722 = vmatpush.msra.mxu0 0.0
    %723 = vmatpush.msra.mxu0 0.0
    %724 = vmatpush.msra.mxu0 0.0
    %725 = vmatpush.msra.mxu0 0.0
    %726 = vmatpush.msra.mxu0 0.0
    %727 = vmatpush.msra.mxu0 0.0
    %728 = vmatpush.msra.mxu0 0.0
    %729 = vmatpush.msra.mxu0 0.0
    %730 = vmatpush.msra.mxu0 %v45
    %731 = vmatpush.msra.mxu0 %v44
    %732 = vmatpush.msra.mxu0 %v43
    %733 = vmatpush.msra.mxu0 %v42
    %734 = vmatmul.f32.gmra.mxu0 %v716
    %v735 = vpop.f32.mrf.mxu0
    %v736 = vadd.f32 %v713, %v735
    %737 = vdwg.mxu0
    %v738 = vadd.f32 %v736, %v113
    %v739 = vxor.u32 %v738, 2147483648
    %v740 = vmul.f32 %v739, 1.442695
    %v741 = vpow.pop %v740
    %v742 = vadd.f32 %v741, 1.0
    %v743 = vrcp.pop %v742
    %v744 = vmul.f32 %v742, %v743
    %v745 = vsub.f32 1.0, %v744
    %v746 = vmul.f32 %v743, %v745
    %v747 = vadd.f32 %v743, %v746
    %vm748 = vweird.f32 %v742
    %vm749 = vweird.f32 %v743
    %vm750 = vmor %vm748, %vm749
    %v751 = vsel %vm750, %v743, %v747
    %v752 = vand.u32 2147483647, %v742
    %vm753 = vcmp.eq.f32.partialorder %v752, 8.507059e+37
    %v754 = vand.u32 %v742, 2147483648
    %v755 = vor.u32 1.1754944e-38, %v754
    %v756 = vsel %vm753, %v755, %v751
    %v757 = vmul.f32 1.0, %v756
    %v758 = vtanh.pop %v738
    %760 = vrot.lane.b32.xlu0 %v691, 32
    %v761 = vpop.permute.xlu0 %760
    %v763 = vmul.f32 %v757, %v761
    %765 = vrot.lane.b32.xlu0 %v758, 64
    %v766 = vpop.permute.xlu0 %765
    %v768 = vmul.f32 %v757, %v766
    %770 = vrot.lane.b32.xlu0 %v768, 32
    %v771 = vpop.permute.xlu0 %770
    %v773 = vadd.f32 %v763, %v771
    %v774 = vtanh.pop %v773
    %776 = vrot.lane.b32.xlu0 %v774, 64
    %v777 = vpop.permute.xlu0 %776
    %v779 = vmul.f32 %v757, %v777
    %781 = vrot.lane.b32.xlu0 %v779, 32
    %v782 = vpop.permute.xlu0 %781
    %784 = vst.msk [vmem:[#allocation2] sm:$0xff] %vm60, %v782
    %786 = vrot.lane.b32.xlu0 %v773, 96
    %v787 = vpop.permute.xlu0 %786
    %789 = vst.msk [vmem:[#allocation3] sm:$0xff] %vm60, %v787
    %s790 = scalar_lea.vmem [#allocation4], 48
    %791 = vst.msk [vmem:[%s790] sm:$0xff] %vm60, %v782
    %s792 = scalar_lea.vmem %s0, 56
    %v793 = vld [vmem:[%s792] sm:$0xff]
    %v794 = vld [vmem:[#allocation2] sm:$0xff]
    %v795 = vld [vmem:[#allocation3] sm:$0xff]
    %v797 = vsel %vm60, %v794, 0
    %799 = vmatpush.msra.mxu0 0.0
    %800 = vmatpush.msra.mxu0 0.0
    %801 = vmatpush.msra.mxu0 0.0
    %802 = vmatpush.msra.mxu0 0.0
    %803 = vmatpush.msra.mxu0 0.0
    %804 = vmatpush.msra.mxu0 0.0
    %805 = vmatpush.msra.mxu0 0.0
    %806 = vmatpush.msra.mxu0 0.0
    %807 = vmatpush.msra.mxu0 0.0
    %808 = vmatpush.msra.mxu0 0.0
    %809 = vmatpush.msra.mxu0 0.0
    %810 = vmatpush.msra.mxu0 0.0
    %811 = vmatpush.msra.mxu0 %v49
    %812 = vmatpush.msra.mxu0 %v48
    %813 = vmatpush.msra.mxu0 %v47
    %814 = vmatpush.msra.mxu0 %v46
    %815 = vmatmul.f32.gmra.mxu0 %v797
    %v816 = vpop.f32.mrf.mxu0
    %v817 = vadd.f32 0.0, %v816
    %818 = vdwg.mxu0
    %v820 = vsel %vm60, %v793, 0
    %822 = vmatpush.msra.mxu0 0.0
    %823 = vmatpush.msra.mxu0 0.0
    %824 = vmatpush.msra.mxu0 0.0
    %825 = vmatpush.msra.mxu0 0.0
    %826 = vmatpush.msra.mxu0 0.0
    %827 = vmatpush.msra.mxu0 0.0
    %828 = vmatpush.msra.mxu0 0.0
    %829 = vmatpush.msra.mxu0 0.0
    %830 = vmatpush.msra.mxu0 0.0
    %831 = vmatpush.msra.mxu0 0.0
    %832 = vmatpush.msra.mxu0 0.0
    %833 = vmatpush.msra.mxu0 0.0
    %834 = vmatpush.msra.mxu0 %v45
    %835 = vmatpush.msra.mxu0 %v44
    %836 = vmatpush.msra.mxu0 %v43
    %837 = vmatpush.msra.mxu0 %v42
    %838 = vmatmul.f32.gmra.mxu0 %v820
    %v839 = vpop.f32.mrf.mxu0
    %v840 = vadd.f32 %v817, %v839
    %841 = vdwg.mxu0
    %v842 = vadd.f32 %v840, %v113
    %v843 = vxor.u32 %v842, 2147483648
    %v844 = vmul.f32 %v843, 1.442695
    %v845 = vpow.pop %v844
    %v846 = vadd.f32 %v845, 1.0
    %v847 = vrcp.pop %v846
    %v848 = vmul.f32 %v846, %v847
    %v849 = vsub.f32 1.0, %v848
    %v850 = vmul.f32 %v847, %v849
    %v851 = vadd.f32 %v847, %v850
    %vm852 = vweird.f32 %v846
    %vm853 = vweird.f32 %v847
    %vm854 = vmor %vm852, %vm853
    %v855 = vsel %vm854, %v847, %v851
    %v856 = vand.u32 2147483647, %v846
    %vm857 = vcmp.eq.f32.partialorder %v856, 8.507059e+37
    %v858 = vand.u32 %v846, 2147483648
    %v859 = vor.u32 1.1754944e-38, %v858
    %v860 = vsel %vm857, %v859, %v855
    %v861 = vmul.f32 1.0, %v860
    %v862 = vtanh.pop %v842
    %864 = vrot.lane.b32.xlu0 %v795, 32
    %v865 = vpop.permute.xlu0 %864
    %v867 = vmul.f32 %v861, %v865
    %869 = vrot.lane.b32.xlu0 %v862, 64
    %v870 = vpop.permute.xlu0 %869
    %v872 = vmul.f32 %v861, %v870
    %874 = vrot.lane.b32.xlu0 %v872, 32
    %v875 = vpop.permute.xlu0 %874
    %v877 = vadd.f32 %v867, %v875
    %v878 = vtanh.pop %v877
    %880 = vrot.lane.b32.xlu0 %v878, 64
    %v881 = vpop.permute.xlu0 %880
    %v883 = vmul.f32 %v861, %v881
    %885 = vrot.lane.b32.xlu0 %v883, 32
    %v886 = vpop.permute.xlu0 %885
    %888 = vst.msk [vmem:[#allocation2] sm:$0xff] %vm60, %v886
    %890 = vrot.lane.b32.xlu0 %v877, 96
    %v891 = vpop.permute.xlu0 %890
    %893 = vst.msk [vmem:[#allocation3] sm:$0xff] %vm60, %v891
    %s894 = scalar_lea.vmem [#allocation4], 56
    %895 = vst.msk [vmem:[%s894] sm:$0xff] %vm60, %v886
    %896 = vst.msk [vmem:[#allocation2] sm:$0xff] %vm60, 0.0
    %897 = vst.msk [vmem:[#allocation3] sm:$0xff] %vm60, 0.0
    %v898 = vld [vmem:[#allocation4] sm:$0xff]
    %v899 = vld [vmem:[#allocation2] sm:$0xff]
    %v900 = vld [vmem:[#allocation3] sm:$0xff]
    %v902 = vsel %vm60, %v899, 0
    %904 = vmatpush.msra.mxu0 0.0
    %905 = vmatpush.msra.mxu0 0.0
    %906 = vmatpush.msra.mxu0 0.0
    %907 = vmatpush.msra.mxu0 0.0
    %908 = vmatpush.msra.mxu0 0.0
    %909 = vmatpush.msra.mxu0 0.0
    %910 = vmatpush.msra.mxu0 0.0
    %911 = vmatpush.msra.mxu0 0.0
    %912 = vmatpush.msra.mxu0 0.0
    %913 = vmatpush.msra.mxu0 0.0
    %914 = vmatpush.msra.mxu0 0.0
    %915 = vmatpush.msra.mxu0 0.0
    %916 = vmatpush.msra.mxu0 %v58
    %917 = vmatpush.msra.mxu0 %v57
    %918 = vmatpush.msra.mxu0 %v56
    %919 = vmatpush.msra.mxu0 %v55
    %920 = vmatmul.f32.gmra.mxu0 %v902
    %v921 = vpop.f32.mrf.mxu0
    %v922 = vadd.f32 0.0, %v921
    %923 = vdwg.mxu0
    %v925 = vsel %vm60, %v898, 0
    %927 = vmatpush.msra.mxu0 0.0
    %928 = vmatpush.msra.mxu0 0.0
    %929 = vmatpush.msra.mxu0 0.0
    %930 = vmatpush.msra.mxu0 0.0
    %931 = vmatpush.msra.mxu0 0.0
    %932 = vmatpush.msra.mxu0 0.0
    %933 = vmatpush.msra.mxu0 0.0
    %934 = vmatpush.msra.mxu0 0.0
    %935 = vmatpush.msra.mxu0 0.0
    %936 = vmatpush.msra.mxu0 0.0
    %937 = vmatpush.msra.mxu0 0.0
    %938 = vmatpush.msra.mxu0 0.0
    %939 = vmatpush.msra.mxu0 %v54
    %940 = vmatpush.msra.mxu0 %v53
    %941 = vmatpush.msra.mxu0 %v52
    %942 = vmatpush.msra.mxu0 %v51
    %943 = vmatmul.f32.gmra.mxu0 %v925
    %v944 = vpop.f32.mrf.mxu0
    %v945 = vadd.f32 %v922, %v944
    %946 = vdwg.mxu0
    %v948 = vperm.slane %v59, 0
    %v950 = vadd.f32 %v945, %v948
    %v951 = vxor.u32 %v950, 2147483648
    %v952 = vmul.f32 %v951, 1.442695
    %v953 = vpow.pop %v952
    %v954 = vadd.f32 %v953, 1.0
    %v955 = vrcp.pop %v954
    %v956 = vmul.f32 %v954, %v955
    %v957 = vsub.f32 1.0, %v956
    %v958 = vmul.f32 %v955, %v957
    %v959 = vadd.f32 %v955, %v958
    %vm960 = vweird.f32 %v954
    %vm961 = vweird.f32 %v955
    %vm962 = vmor %vm960, %vm961
    %v963 = vsel %vm962, %v955, %v959
    %v964 = vand.u32 2147483647, %v954
    %vm965 = vcmp.eq.f32.partialorder %v964, 8.507059e+37
    %v966 = vand.u32 %v954, 2147483648
    %v967 = vor.u32 1.1754944e-38, %v966
    %v968 = vsel %vm965, %v967, %v963
    %v969 = vmul.f32 1.0, %v968
    %v970 = vtanh.pop %v950
    %972 = vrot.lane.b32.xlu0 %v900, 32
    %v973 = vpop.permute.xlu0 %972
    %v975 = vmul.f32 %v969, %v973
    %977 = vrot.lane.b32.xlu0 %v970, 64
    %v978 = vpop.permute.xlu0 %977
    %v980 = vmul.f32 %v969, %v978
    %982 = vrot.lane.b32.xlu0 %v980, 32
    %v983 = vpop.permute.xlu0 %982
    %v985 = vadd.f32 %v975, %v983
    %v986 = vtanh.pop %v985
    %988 = vrot.lane.b32.xlu0 %v986, 64
    %v989 = vpop.permute.xlu0 %988
    %v991 = vmul.f32 %v969, %v989
    %993 = vrot.lane.b32.xlu0 %v991, 32
    %v994 = vpop.permute.xlu0 %993
    %996 = vst.msk [vmem:[#allocation2] sm:$0xff] %vm60, %v994
    %998 = vrot.lane.b32.xlu0 %v985, 96
    %v999 = vpop.permute.xlu0 %998
    %1001 = vst.msk [vmem:[#allocation3] sm:$0xff] %vm60, %v999
    %1002 = vst.msk [vmem:[%s7] sm:$0xff] %vm60, %v994
    %v1003 = vld [vmem:[%s270] sm:$0xff]
    %v1004 = vld [vmem:[#allocation2] sm:$0xff]
    %v1005 = vld [vmem:[#allocation3] sm:$0xff]
    %v1007 = vsel %vm60, %v1004, 0
    %1009 = vmatpush.msra.mxu0 0.0
    %1010 = vmatpush.msra.mxu0 0.0
    %1011 = vmatpush.msra.mxu0 0.0
    %1012 = vmatpush.msra.mxu0 0.0
    %1013 = vmatpush.msra.mxu0 0.0
    %1014 = vmatpush.msra.mxu0 0.0
    %1015 = vmatpush.msra.mxu0 0.0
    %1016 = vmatpush.msra.mxu0 0.0
    %1017 = vmatpush.msra.mxu0 0.0
    %1018 = vmatpush.msra.mxu0 0.0
    %1019 = vmatpush.msra.mxu0 0.0
    %1020 = vmatpush.msra.mxu0 0.0
    %1021 = vmatpush.msra.mxu0 %v58
    %1022 = vmatpush.msra.mxu0 %v57
    %1023 = vmatpush.msra.mxu0 %v56
    %1024 = vmatpush.msra.mxu0 %v55
    %1025 = vmatmul.f32.gmra.mxu0 %v1007
    %v1026 = vpop.f32.mrf.mxu0
    %v1027 = vadd.f32 0.0, %v1026
    %1028 = vdwg.mxu0
    %v1030 = vsel %vm60, %v1003, 0
    %1032 = vmatpush.msra.mxu0 0.0
    %1033 = vmatpush.msra.mxu0 0.0
    %1034 = vmatpush.msra.mxu0 0.0
    %1035 = vmatpush.msra.mxu0 0.0
    %1036 = vmatpush.msra.mxu0 0.0
    %1037 = vmatpush.msra.mxu0 0.0
    %1038 = vmatpush.msra.mxu0 0.0
    %1039 = vmatpush.msra.mxu0 0.0
    %1040 = vmatpush.msra.mxu0 0.0
    %1041 = vmatpush.msra.mxu0 0.0
    %1042 = vmatpush.msra.mxu0 0.0
    %1043 = vmatpush.msra.mxu0 0.0
    %1044 = vmatpush.msra.mxu0 %v54
    %1045 = vmatpush.msra.mxu0 %v53
    %1046 = vmatpush.msra.mxu0 %v52
    %1047 = vmatpush.msra.mxu0 %v51
    %1048 = vmatmul.f32.gmra.mxu0 %v1030
    %v1049 = vpop.f32.mrf.mxu0
    %v1050 = vadd.f32 %v1027, %v1049
    %1051 = vdwg.mxu0
    %v1052 = vadd.f32 %v1050, %v948
    %v1053 = vxor.u32 %v1052, 2147483648
    %v1054 = vmul.f32 %v1053, 1.442695
    %v1055 = vpow.pop %v1054
    %v1056 = vadd.f32 %v1055, 1.0
    %v1057 = vrcp.pop %v1056
    %v1058 = vmul.f32 %v1056, %v1057
    %v1059 = vsub.f32 1.0, %v1058
    %v1060 = vmul.f32 %v1057, %v1059
    %v1061 = vadd.f32 %v1057, %v1060
    %vm1062 = vweird.f32 %v1056
    %vm1063 = vweird.f32 %v1057
    %vm1064 = vmor %vm1062, %vm1063
    %v1065 = vsel %vm1064, %v1057, %v1061
    %v1066 = vand.u32 2147483647, %v1056
    %vm1067 = vcmp.eq.f32.partialorder %v1066, 8.507059e+37
    %v1068 = vand.u32 %v1056, 2147483648
    %v1069 = vor.u32 1.1754944e-38, %v1068
    %v1070 = vsel %vm1067, %v1069, %v1065
    %v1071 = vmul.f32 1.0, %v1070
    %v1072 = vtanh.pop %v1052
    %1074 = vrot.lane.b32.xlu0 %v1005, 32
    %v1075 = vpop.permute.xlu0 %1074
    %v1077 = vmul.f32 %v1071, %v1075
    %1079 = vrot.lane.b32.xlu0 %v1072, 64
    %v1080 = vpop.permute.xlu0 %1079
    %v1082 = vmul.f32 %v1071, %v1080
    %1084 = vrot.lane.b32.xlu0 %v1082, 32
    %v1085 = vpop.permute.xlu0 %1084
    %v1087 = vadd.f32 %v1077, %v1085
    %v1088 = vtanh.pop %v1087
    %1090 = vrot.lane.b32.xlu0 %v1088, 64
    %v1091 = vpop.permute.xlu0 %1090
    %v1093 = vmul.f32 %v1071, %v1091
    %1095 = vrot.lane.b32.xlu0 %v1093, 32
    %v1096 = vpop.permute.xlu0 %1095
    %1098 = vst.msk [vmem:[#allocation2] sm:$0xff] %vm60, %v1096
    %1100 = vrot.lane.b32.xlu0 %v1087, 96
    %v1101 = vpop.permute.xlu0 %1100
    %1103 = vst.msk [vmem:[#allocation3] sm:$0xff] %vm60, %v1101
    %s1104 = scalar_lea.vmem %s7, 8
    %1105 = vst.msk [vmem:[%s1104] sm:$0xff] %vm60, %v1096
    %v1106 = vld [vmem:[%s374] sm:$0xff]
    %v1107 = vld [vmem:[#allocation2] sm:$0xff]
    %v1108 = vld [vmem:[#allocation3] sm:$0xff]
    %v1110 = vsel %vm60, %v1107, 0
    %1112 = vmatpush.msra.mxu0 0.0
    %1113 = vmatpush.msra.mxu0 0.0
    %1114 = vmatpush.msra.mxu0 0.0
    %1115 = vmatpush.msra.mxu0 0.0
    %1116 = vmatpush.msra.mxu0 0.0
    %1117 = vmatpush.msra.mxu0 0.0
    %1118 = vmatpush.msra.mxu0 0.0
    %1119 = vmatpush.msra.mxu0 0.0
    %1120 = vmatpush.msra.mxu0 0.0
    %1121 = vmatpush.msra.mxu0 0.0
    %1122 = vmatpush.msra.mxu0 0.0
    %1123 = vmatpush.msra.mxu0 0.0
    %1124 = vmatpush.msra.mxu0 %v58
    %1125 = vmatpush.msra.mxu0 %v57
    %1126 = vmatpush.msra.mxu0 %v56
    %1127 = vmatpush.msra.mxu0 %v55
    %1128 = vmatmul.f32.gmra.mxu0 %v1110
    %v1129 = vpop.f32.mrf.mxu0
    %v1130 = vadd.f32 0.0, %v1129
    %1131 = vdwg.mxu0
    %v1133 = vsel %vm60, %v1106, 0
    %1135 = vmatpush.msra.mxu0 0.0
    %1136 = vmatpush.msra.mxu0 0.0
    %1137 = vmatpush.msra.mxu0 0.0
    %1138 = vmatpush.msra.mxu0 0.0
    %1139 = vmatpush.msra.mxu0 0.0
    %1140 = vmatpush.msra.mxu0 0.0
    %1141 = vmatpush.msra.mxu0 0.0
    %1142 = vmatpush.msra.mxu0 0.0
    %1143 = vmatpush.msra.mxu0 0.0
    %1144 = vmatpush.msra.mxu0 0.0
    %1145 = vmatpush.msra.mxu0 0.0
    %1146 = vmatpush.msra.mxu0 0.0
    %1147 = vmatpush.msra.mxu0 %v54
    %1148 = vmatpush.msra.mxu0 %v53
    %1149 = vmatpush.msra.mxu0 %v52
    %1150 = vmatpush.msra.mxu0 %v51
    %1151 = vmatmul.f32.gmra.mxu0 %v1133
    %v1152 = vpop.f32.mrf.mxu0
    %v1153 = vadd.f32 %v1130, %v1152
    %1154 = vdwg.mxu0
    %v1155 = vadd.f32 %v1153, %v948
    %v1156 = vxor.u32 %v1155, 2147483648
    %v1157 = vmul.f32 %v1156, 1.442695
    %v1158 = vpow.pop %v1157
    %v1159 = vadd.f32 %v1158, 1.0
    %v1160 = vrcp.pop %v1159
    %v1161 = vmul.f32 %v1159, %v1160
    %v1162 = vsub.f32 1.0, %v1161
    %v1163 = vmul.f32 %v1160, %v1162
    %v1164 = vadd.f32 %v1160, %v1163
    %vm1165 = vweird.f32 %v1159
    %vm1166 = vweird.f32 %v1160
    %vm1167 = vmor %vm1165, %vm1166
    %v1168 = vsel %vm1167, %v1160, %v1164
    %v1169 = vand.u32 2147483647, %v1159
    %vm1170 = vcmp.eq.f32.partialorder %v1169, 8.507059e+37
    %v1171 = vand.u32 %v1159, 2147483648
    %v1172 = vor.u32 1.1754944e-38, %v1171
    %v1173 = vsel %vm1170, %v1172, %v1168
    %v1174 = vmul.f32 1.0, %v1173
    %v1175 = vtanh.pop %v1155
    %1177 = vrot.lane.b32.xlu0 %v1108, 32
    %v1178 = vpop.permute.xlu0 %1177
    %v1180 = vmul.f32 %v1174, %v1178
    %1182 = vrot.lane.b32.xlu0 %v1175, 64
    %v1183 = vpop.permute.xlu0 %1182
    %v1185 = vmul.f32 %v1174, %v1183
    %1187 = vrot.lane.b32.xlu0 %v1185, 32
    %v1188 = vpop.permute.xlu0 %1187
    %v1190 = vadd.f32 %v1180, %v1188
    %v1191 = vtanh.pop %v1190
    %1193 = vrot.lane.b32.xlu0 %v1191, 64
    %v1194 = vpop.permute.xlu0 %1193
    %v1196 = vmul.f32 %v1174, %v1194
    %1198 = vrot.lane.b32.xlu0 %v1196, 32
    %v1199 = vpop.permute.xlu0 %1198
    %1201 = vst.msk [vmem:[#allocation2] sm:$0xff] %vm60, %v1199
    %1203 = vrot.lane.b32.xlu0 %v1190, 96
    %v1204 = vpop.permute.xlu0 %1203
    %1206 = vst.msk [vmem:[#allocation3] sm:$0xff] %vm60, %v1204
    %s1207 = scalar_lea.vmem %s7, 16
    %1208 = vst.msk [vmem:[%s1207] sm:$0xff] %vm60, %v1199
    %v1209 = vld [vmem:[%s478] sm:$0xff]
    %v1210 = vld [vmem:[#allocation2] sm:$0xff]
    %v1211 = vld [vmem:[#allocation3] sm:$0xff]
    %v1213 = vsel %vm60, %v1210, 0
    %1215 = vmatpush.msra.mxu0 0.0
    %1216 = vmatpush.msra.mxu0 0.0
    %1217 = vmatpush.msra.mxu0 0.0
    %1218 = vmatpush.msra.mxu0 0.0
    %1219 = vmatpush.msra.mxu0 0.0
    %1220 = vmatpush.msra.mxu0 0.0
    %1221 = vmatpush.msra.mxu0 0.0
    %1222 = vmatpush.msra.mxu0 0.0
    %1223 = vmatpush.msra.mxu0 0.0
    %1224 = vmatpush.msra.mxu0 0.0
    %1225 = vmatpush.msra.mxu0 0.0
    %1226 = vmatpush.msra.mxu0 0.0
    %1227 = vmatpush.msra.mxu0 %v58
    %1228 = vmatpush.msra.mxu0 %v57
    %1229 = vmatpush.msra.mxu0 %v56
    %1230 = vmatpush.msra.mxu0 %v55
    %1231 = vmatmul.f32.gmra.mxu0 %v1213
    %v1232 = vpop.f32.mrf.mxu0
    %v1233 = vadd.f32 0.0, %v1232
    %1234 = vdwg.mxu0
    %v1236 = vsel %vm60, %v1209, 0
    %1238 = vmatpush.msra.mxu0 0.0
    %1239 = vmatpush.msra.mxu0 0.0
    %1240 = vmatpush.msra.mxu0 0.0
    %1241 = vmatpush.msra.mxu0 0.0
    %1242 = vmatpush.msra.mxu0 0.0
    %1243 = vmatpush.msra.mxu0 0.0
    %1244 = vmatpush.msra.mxu0 0.0
    %1245 = vmatpush.msra.mxu0 0.0
    %1246 = vmatpush.msra.mxu0 0.0
    %1247 = vmatpush.msra.mxu0 0.0
    %1248 = vmatpush.msra.mxu0 0.0
    %1249 = vmatpush.msra.mxu0 0.0
    %1250 = vmatpush.msra.mxu0 %v54
    %1251 = vmatpush.msra.mxu0 %v53
    %1252 = vmatpush.msra.mxu0 %v52
    %1253 = vmatpush.msra.mxu0 %v51
    %1254 = vmatmul.f32.gmra.mxu0 %v1236
    %v1255 = vpop.f32.mrf.mxu0
    %v1256 = vadd.f32 %v1233, %v1255
    %1257 = vdwg.mxu0
    %v1258 = vadd.f32 %v1256, %v948
    %v1259 = vxor.u32 %v1258, 2147483648
    %v1260 = vmul.f32 %v1259, 1.442695
    %v1261 = vpow.pop %v1260
    %v1262 = vadd.f32 %v1261, 1.0
    %v1263 = vrcp.pop %v1262
    %v1264 = vmul.f32 %v1262, %v1263
    %v1265 = vsub.f32 1.0, %v1264
    %v1266 = vmul.f32 %v1263, %v1265
    %v1267 = vadd.f32 %v1263, %v1266
    %vm1268 = vweird.f32 %v1262
    %vm1269 = vweird.f32 %v1263
    %vm1270 = vmor %vm1268, %vm1269
    %v1271 = vsel %vm1270, %v1263, %v1267
    %v1272 = vand.u32 2147483647, %v1262
    %vm1273 = vcmp.eq.f32.partialorder %v1272, 8.507059e+37
    %v1274 = vand.u32 %v1262, 2147483648
    %v1275 = vor.u32 1.1754944e-38, %v1274
    %v1276 = vsel %vm1273, %v1275, %v1271
    %v1277 = vmul.f32 1.0, %v1276
    %v1278 = vtanh.pop %v1258
    %1280 = vrot.lane.b32.xlu0 %v1211, 32
    %v1281 = vpop.permute.xlu0 %1280
    %v1283 = vmul.f32 %v1277, %v1281
    %1285 = vrot.lane.b32.xlu0 %v1278, 64
    %v1286 = vpop.permute.xlu0 %1285
    %v1288 = vmul.f32 %v1277, %v1286
    %1290 = vrot.lane.b32.xlu0 %v1288, 32
    %v1291 = vpop.permute.xlu0 %1290
    %v1293 = vadd.f32 %v1283, %v1291
    %v1294 = vtanh.pop %v1293
    %1296 = vrot.lane.b32.xlu0 %v1294, 64
    %v1297 = vpop.permute.xlu0 %1296
    %v1299 = vmul.f32 %v1277, %v1297
    %1301 = vrot.lane.b32.xlu0 %v1299, 32
    %v1302 = vpop.permute.xlu0 %1301
    %1304 = vst.msk [vmem:[#allocation2] sm:$0xff] %vm60, %v1302
    %1306 = vrot.lane.b32.xlu0 %v1293, 96
    %v1307 = vpop.permute.xlu0 %1306
    %1309 = vst.msk [vmem:[#allocation3] sm:$0xff] %vm60, %v1307
    %s1310 = scalar_lea.vmem %s7, 24
    %1311 = vst.msk [vmem:[%s1310] sm:$0xff] %vm60, %v1302
    %v1312 = vld [vmem:[%s582] sm:$0xff]
    %v1313 = vld [vmem:[#allocation2] sm:$0xff]
    %v1314 = vld [vmem:[#allocation3] sm:$0xff]
    %v1316 = vsel %vm60, %v1313, 0
    %1318 = vmatpush.msra.mxu0 0.0
    %1319 = vmatpush.msra.mxu0 0.0
    %1320 = vmatpush.msra.mxu0 0.0
    %1321 = vmatpush.msra.mxu0 0.0
    %1322 = vmatpush.msra.mxu0 0.0
    %1323 = vmatpush.msra.mxu0 0.0
    %1324 = vmatpush.msra.mxu0 0.0
    %1325 = vmatpush.msra.mxu0 0.0
    %1326 = vmatpush.msra.mxu0 0.0
    %1327 = vmatpush.msra.mxu0 0.0
    %1328 = vmatpush.msra.mxu0 0.0
    %1329 = vmatpush.msra.mxu0 0.0
    %1330 = vmatpush.msra.mxu0 %v58
    %1331 = vmatpush.msra.mxu0 %v57
    %1332 = vmatpush.msra.mxu0 %v56
    %1333 = vmatpush.msra.mxu0 %v55
    %1334 = vmatmul.f32.gmra.mxu0 %v1316
    %v1335 = vpop.f32.mrf.mxu0
    %v1336 = vadd.f32 0.0, %v1335
    %1337 = vdwg.mxu0
    %v1339 = vsel %vm60, %v1312, 0
    %1341 = vmatpush.msra.mxu0 0.0
    %1342 = vmatpush.msra.mxu0 0.0
    %1343 = vmatpush.msra.mxu0 0.0
    %1344 = vmatpush.msra.mxu0 0.0
    %1345 = vmatpush.msra.mxu0 0.0
    %1346 = vmatpush.msra.mxu0 0.0
    %1347 = vmatpush.msra.mxu0 0.0
    %1348 = vmatpush.msra.mxu0 0.0
    %1349 = vmatpush.msra.mxu0 0.0
    %1350 = vmatpush.msra.mxu0 0.0
    %1351 = vmatpush.msra.mxu0 0.0
    %1352 = vmatpush.msra.mxu0 0.0
    %1353 = vmatpush.msra.mxu0 %v54
    %1354 = vmatpush.msra.mxu0 %v53
    %1355 = vmatpush.msra.mxu0 %v52
    %1356 = vmatpush.msra.mxu0 %v51
    %1357 = vmatmul.f32.gmra.mxu0 %v1339
    %v1358 = vpop.f32.mrf.mxu0
    %v1359 = vadd.f32 %v1336, %v1358
    %1360 = vdwg.mxu0
    %v1361 = vadd.f32 %v1359, %v948
    %v1362 = vxor.u32 %v1361, 2147483648
    %v1363 = vmul.f32 %v1362, 1.442695
    %v1364 = vpow.pop %v1363
    %v1365 = vadd.f32 %v1364, 1.0
    %v1366 = vrcp.pop %v1365
    %v1367 = vmul.f32 %v1365, %v1366
    %v1368 = vsub.f32 1.0, %v1367
    %v1369 = vmul.f32 %v1366, %v1368
    %v1370 = vadd.f32 %v1366, %v1369
    %vm1371 = vweird.f32 %v1365
    %vm1372 = vweird.f32 %v1366
    %vm1373 = vmor %vm1371, %vm1372
    %v1374 = vsel %vm1373, %v1366, %v1370
    %v1375 = vand.u32 2147483647, %v1365
    %vm1376 = vcmp.eq.f32.partialorder %v1375, 8.507059e+37
    %v1377 = vand.u32 %v1365, 2147483648
    %v1378 = vor.u32 1.1754944e-38, %v1377
    %v1379 = vsel %vm1376, %v1378, %v1374
    %v1380 = vmul.f32 1.0, %v1379
    %v1381 = vtanh.pop %v1361
    %1383 = vrot.lane.b32.xlu0 %v1314, 32
    %v1384 = vpop.permute.xlu0 %1383
    %v1386 = vmul.f32 %v1380, %v1384
    %1388 = vrot.lane.b32.xlu0 %v1381, 64
    %v1389 = vpop.permute.xlu0 %1388
    %v1391 = vmul.f32 %v1380, %v1389
    %1393 = vrot.lane.b32.xlu0 %v1391, 32
    %v1394 = vpop.permute.xlu0 %1393
    %v1396 = vadd.f32 %v1386, %v1394
    %v1397 = vtanh.pop %v1396
    %1399 = vrot.lane.b32.xlu0 %v1397, 64
    %v1400 = vpop.permute.xlu0 %1399
    %v1402 = vmul.f32 %v1380, %v1400
    %1404 = vrot.lane.b32.xlu0 %v1402, 32
    %v1405 = vpop.permute.xlu0 %1404
    %1407 = vst.msk [vmem:[#allocation2] sm:$0xff] %vm60, %v1405
    %1409 = vrot.lane.b32.xlu0 %v1396, 96
    %v1410 = vpop.permute.xlu0 %1409
    %1412 = vst.msk [vmem:[#allocation3] sm:$0xff] %vm60, %v1410
    %s1413 = scalar_lea.vmem %s7, 32
    %1414 = vst.msk [vmem:[%s1413] sm:$0xff] %vm60, %v1405
    %v1415 = vld [vmem:[%s686] sm:$0xff]
    %v1416 = vld [vmem:[#allocation2] sm:$0xff]
    %v1417 = vld [vmem:[#allocation3] sm:$0xff]
    %v1419 = vsel %vm60, %v1416, 0
    %1421 = vmatpush.msra.mxu0 0.0
    %1422 = vmatpush.msra.mxu0 0.0
    %1423 = vmatpush.msra.mxu0 0.0
    %1424 = vmatpush.msra.mxu0 0.0
    %1425 = vmatpush.msra.mxu0 0.0
    %1426 = vmatpush.msra.mxu0 0.0
    %1427 = vmatpush.msra.mxu0 0.0
    %1428 = vmatpush.msra.mxu0 0.0
    %1429 = vmatpush.msra.mxu0 0.0
    %1430 = vmatpush.msra.mxu0 0.0
    %1431 = vmatpush.msra.mxu0 0.0
    %1432 = vmatpush.msra.mxu0 0.0
    %1433 = vmatpush.msra.mxu0 %v58
    %1434 = vmatpush.msra.mxu0 %v57
    %1435 = vmatpush.msra.mxu0 %v56
    %1436 = vmatpush.msra.mxu0 %v55
    %1437 = vmatmul.f32.gmra.mxu0 %v1419
    %v1438 = vpop.f32.mrf.mxu0
    %v1439 = vadd.f32 0.0, %v1438
    %1440 = vdwg.mxu0
    %v1442 = vsel %vm60, %v1415, 0
    %1444 = vmatpush.msra.mxu0 0.0
    %1445 = vmatpush.msra.mxu0 0.0
    %1446 = vmatpush.msra.mxu0 0.0
    %1447 = vmatpush.msra.mxu0 0.0
    %1448 = vmatpush.msra.mxu0 0.0
    %1449 = vmatpush.msra.mxu0 0.0
    %1450 = vmatpush.msra.mxu0 0.0
    %1451 = vmatpush.msra.mxu0 0.0
    %1452 = vmatpush.msra.mxu0 0.0
    %1453 = vmatpush.msra.mxu0 0.0
    %1454 = vmatpush.msra.mxu0 0.0
    %1455 = vmatpush.msra.mxu0 0.0
    %1456 = vmatpush.msra.mxu0 %v54
    %1457 = vmatpush.msra.mxu0 %v53
    %1458 = vmatpush.msra.mxu0 %v52
    %1459 = vmatpush.msra.mxu0 %v51
    %1460 = vmatmul.f32.gmra.mxu0 %v1442
    %v1461 = vpop.f32.mrf.mxu0
    %v1462 = vadd.f32 %v1439, %v1461
    %1463 = vdwg.mxu0
    %v1464 = vadd.f32 %v1462, %v948
    %v1465 = vxor.u32 %v1464, 2147483648
    %v1466 = vmul.f32 %v1465, 1.442695
    %v1467 = vpow.pop %v1466
    %v1468 = vadd.f32 %v1467, 1.0
    %v1469 = vrcp.pop %v1468
    %v1470 = vmul.f32 %v1468, %v1469
    %v1471 = vsub.f32 1.0, %v1470
    %v1472 = vmul.f32 %v1469, %v1471
    %v1473 = vadd.f32 %v1469, %v1472
    %vm1474 = vweird.f32 %v1468
    %vm1475 = vweird.f32 %v1469
    %vm1476 = vmor %vm1474, %vm1475
    %v1477 = vsel %vm1476, %v1469, %v1473
    %v1478 = vand.u32 2147483647, %v1468
    %vm1479 = vcmp.eq.f32.partialorder %v1478, 8.507059e+37
    %v1480 = vand.u32 %v1468, 2147483648
    %v1481 = vor.u32 1.1754944e-38, %v1480
    %v1482 = vsel %vm1479, %v1481, %v1477
    %v1483 = vmul.f32 1.0, %v1482
    %v1484 = vtanh.pop %v1464
    %1486 = vrot.lane.b32.xlu0 %v1417, 32
    %v1487 = vpop.permute.xlu0 %1486
    %v1489 = vmul.f32 %v1483, %v1487
    %1491 = vrot.lane.b32.xlu0 %v1484, 64
    %v1492 = vpop.permute.xlu0 %1491
    %v1494 = vmul.f32 %v1483, %v1492
    %1496 = vrot.lane.b32.xlu0 %v1494, 32
    %v1497 = vpop.permute.xlu0 %1496
    %v1499 = vadd.f32 %v1489, %v1497
    %v1500 = vtanh.pop %v1499
    %1502 = vrot.lane.b32.xlu0 %v1500, 64
    %v1503 = vpop.permute.xlu0 %1502
    %v1505 = vmul.f32 %v1483, %v1503
    %1507 = vrot.lane.b32.xlu0 %v1505, 32
    %v1508 = vpop.permute.xlu0 %1507
    %1510 = vst.msk [vmem:[#allocation2] sm:$0xff] %vm60, %v1508
    %1512 = vrot.lane.b32.xlu0 %v1499, 96
    %v1513 = vpop.permute.xlu0 %1512
    %1515 = vst.msk [vmem:[#allocation3] sm:$0xff] %vm60, %v1513
    %s1516 = scalar_lea.vmem %s7, 40
    %1517 = vst.msk [vmem:[%s1516] sm:$0xff] %vm60, %v1508
    %v1518 = vld [vmem:[%s790] sm:$0xff]
    %v1519 = vld [vmem:[#allocation2] sm:$0xff]
    %v1520 = vld [vmem:[#allocation3] sm:$0xff]
    %v1522 = vsel %vm60, %v1519, 0
    %1524 = vmatpush.msra.mxu0 0.0
    %1525 = vmatpush.msra.mxu0 0.0
    %1526 = vmatpush.msra.mxu0 0.0
    %1527 = vmatpush.msra.mxu0 0.0
    %1528 = vmatpush.msra.mxu0 0.0
    %1529 = vmatpush.msra.mxu0 0.0
    %1530 = vmatpush.msra.mxu0 0.0
    %1531 = vmatpush.msra.mxu0 0.0
    %1532 = vmatpush.msra.mxu0 0.0
    %1533 = vmatpush.msra.mxu0 0.0
    %1534 = vmatpush.msra.mxu0 0.0
    %1535 = vmatpush.msra.mxu0 0.0
    %1536 = vmatpush.msra.mxu0 %v58
    %1537 = vmatpush.msra.mxu0 %v57
    %1538 = vmatpush.msra.mxu0 %v56
    %1539 = vmatpush.msra.mxu0 %v55
    %1540 = vmatmul.f32.gmra.mxu0 %v1522
    %v1541 = vpop.f32.mrf.mxu0
    %v1542 = vadd.f32 0.0, %v1541
    %1543 = vdwg.mxu0
    %v1545 = vsel %vm60, %v1518, 0
    %1547 = vmatpush.msra.mxu0 0.0
    %1548 = vmatpush.msra.mxu0 0.0
    %1549 = vmatpush.msra.mxu0 0.0
    %1550 = vmatpush.msra.mxu0 0.0
    %1551 = vmatpush.msra.mxu0 0.0
    %1552 = vmatpush.msra.mxu0 0.0
    %1553 = vmatpush.msra.mxu0 0.0
    %1554 = vmatpush.msra.mxu0 0.0
    %1555 = vmatpush.msra.mxu0 0.0
    %1556 = vmatpush.msra.mxu0 0.0
    %1557 = vmatpush.msra.mxu0 0.0
    %1558 = vmatpush.msra.mxu0 0.0
    %1559 = vmatpush.msra.mxu0 %v54
    %1560 = vmatpush.msra.mxu0 %v53
    %1561 = vmatpush.msra.mxu0 %v52
    %1562 = vmatpush.msra.mxu0 %v51
    %1563 = vmatmul.f32.gmra.mxu0 %v1545
    %v1564 = vpop.f32.mrf.mxu0
    %v1565 = vadd.f32 %v1542, %v1564
    %1566 = vdwg.mxu0
    %v1567 = vadd.f32 %v1565, %v948
    %v1568 = vxor.u32 %v1567, 2147483648
    %v1569 = vmul.f32 %v1568, 1.442695
    %v1570 = vpow.pop %v1569
    %v1571 = vadd.f32 %v1570, 1.0
    %v1572 = vrcp.pop %v1571
    %v1573 = vmul.f32 %v1571, %v1572
    %v1574 = vsub.f32 1.0, %v1573
    %v1575 = vmul.f32 %v1572, %v1574
    %v1576 = vadd.f32 %v1572, %v1575
    %vm1577 = vweird.f32 %v1571
    %vm1578 = vweird.f32 %v1572
    %vm1579 = vmor %vm1577, %vm1578
    %v1580 = vsel %vm1579, %v1572, %v1576
    %v1581 = vand.u32 2147483647, %v1571
    %vm1582 = vcmp.eq.f32.partialorder %v1581, 8.507059e+37
    %v1583 = vand.u32 %v1571, 2147483648
    %v1584 = vor.u32 1.1754944e-38, %v1583
    %v1585 = vsel %vm1582, %v1584, %v1580
    %v1586 = vmul.f32 1.0, %v1585
    %v1587 = vtanh.pop %v1567
    %1589 = vrot.lane.b32.xlu0 %v1520, 32
    %v1590 = vpop.permute.xlu0 %1589
    %v1592 = vmul.f32 %v1586, %v1590
    %1594 = vrot.lane.b32.xlu0 %v1587, 64
    %v1595 = vpop.permute.xlu0 %1594
    %v1597 = vmul.f32 %v1586, %v1595
    %1599 = vrot.lane.b32.xlu0 %v1597, 32
    %v1600 = vpop.permute.xlu0 %1599
    %v1602 = vadd.f32 %v1592, %v1600
    %v1603 = vtanh.pop %v1602
    %1605 = vrot.lane.b32.xlu0 %v1603, 64
    %v1606 = vpop.permute.xlu0 %1605
    %v1608 = vmul.f32 %v1586, %v1606
    %1610 = vrot.lane.b32.xlu0 %v1608, 32
    %v1611 = vpop.permute.xlu0 %1610
    %1613 = vst.msk [vmem:[#allocation2] sm:$0xff] %vm60, %v1611
    %1615 = vrot.lane.b32.xlu0 %v1602, 96
    %v1616 = vpop.permute.xlu0 %1615
    %1618 = vst.msk [vmem:[#allocation3] sm:$0xff] %vm60, %v1616
    %s1619 = scalar_lea.vmem %s7, 48
    %1620 = vst.msk [vmem:[%s1619] sm:$0xff] %vm60, %v1611
    %v1621 = vld [vmem:[%s894] sm:$0xff]
    %v1622 = vld [vmem:[#allocation2] sm:$0xff]
    %v1623 = vld [vmem:[#allocation3] sm:$0xff]
    %v1625 = vsel %vm60, %v1622, 0
    %1627 = vmatpush.msra.mxu0 0.0
    %1628 = vmatpush.msra.mxu0 0.0
    %1629 = vmatpush.msra.mxu0 0.0
    %1630 = vmatpush.msra.mxu0 0.0
    %1631 = vmatpush.msra.mxu0 0.0
    %1632 = vmatpush.msra.mxu0 0.0
    %1633 = vmatpush.msra.mxu0 0.0
    %1634 = vmatpush.msra.mxu0 0.0
    %1635 = vmatpush.msra.mxu0 0.0
    %1636 = vmatpush.msra.mxu0 0.0
    %1637 = vmatpush.msra.mxu0 0.0
    %1638 = vmatpush.msra.mxu0 0.0
    %1639 = vmatpush.msra.mxu0 %v58
    %1640 = vmatpush.msra.mxu0 %v57
    %1641 = vmatpush.msra.mxu0 %v56
    %1642 = vmatpush.msra.mxu0 %v55
    %1643 = vmatmul.f32.gmra.mxu0 %v1625
    %v1644 = vpop.f32.mrf.mxu0
    %v1645 = vadd.f32 0.0, %v1644
    %1646 = vdwg.mxu0
    %v1648 = vsel %vm60, %v1621, 0
    %1650 = vmatpush.msra.mxu0 0.0
    %1651 = vmatpush.msra.mxu0 0.0
    %1652 = vmatpush.msra.mxu0 0.0
    %1653 = vmatpush.msra.mxu0 0.0
    %1654 = vmatpush.msra.mxu0 0.0
    %1655 = vmatpush.msra.mxu0 0.0
    %1656 = vmatpush.msra.mxu0 0.0
    %1657 = vmatpush.msra.mxu0 0.0
    %1658 = vmatpush.msra.mxu0 0.0
    %1659 = vmatpush.msra.mxu0 0.0
    %1660 = vmatpush.msra.mxu0 0.0
    %1661 = vmatpush.msra.mxu0 0.0
    %1662 = vmatpush.msra.mxu0 %v54
    %1663 = vmatpush.msra.mxu0 %v53
    %1664 = vmatpush.msra.mxu0 %v52
    %1665 = vmatpush.msra.mxu0 %v51
    %1666 = vmatmul.f32.gmra.mxu0 %v1648
    %v1667 = vpop.f32.mrf.mxu0
    %v1668 = vadd.f32 %v1645, %v1667
    %1669 = vdwg.mxu0
    %v1670 = vadd.f32 %v1668, %v948
    %v1671 = vxor.u32 %v1670, 2147483648
    %v1672 = vmul.f32 %v1671, 1.442695
    %v1673 = vpow.pop %v1672
    %v1674 = vadd.f32 %v1673, 1.0
    %v1675 = vrcp.pop %v1674
    %v1676 = vmul.f32 %v1674, %v1675
    %v1677 = vsub.f32 1.0, %v1676
    %v1678 = vmul.f32 %v1675, %v1677
    %v1679 = vadd.f32 %v1675, %v1678
    %vm1680 = vweird.f32 %v1674
    %vm1681 = vweird.f32 %v1675
    %vm1682 = vmor %vm1680, %vm1681
    %v1683 = vsel %vm1682, %v1675, %v1679
    %v1684 = vand.u32 2147483647, %v1674
    %vm1685 = vcmp.eq.f32.partialorder %v1684, 8.507059e+37
    %v1686 = vand.u32 %v1674, 2147483648
    %v1687 = vor.u32 1.1754944e-38, %v1686
    %v1688 = vsel %vm1685, %v1687, %v1683
    %v1689 = vmul.f32 1.0, %v1688
    %v1690 = vtanh.pop %v1670
    %1692 = vrot.lane.b32.xlu0 %v1623, 32
    %v1693 = vpop.permute.xlu0 %1692
    %v1695 = vmul.f32 %v1689, %v1693
    %1697 = vrot.lane.b32.xlu0 %v1690, 64
    %v1698 = vpop.permute.xlu0 %1697
    %v1700 = vmul.f32 %v1689, %v1698
    %1702 = vrot.lane.b32.xlu0 %v1700, 32
    %v1703 = vpop.permute.xlu0 %1702
    %v1705 = vadd.f32 %v1695, %v1703
    %v1706 = vtanh.pop %v1705
    %1708 = vrot.lane.b32.xlu0 %v1706, 64
    %v1709 = vpop.permute.xlu0 %1708
    %v1711 = vmul.f32 %v1689, %v1709
    %1713 = vrot.lane.b32.xlu0 %v1711, 32
    %v1714 = vpop.permute.xlu0 %1713
    %1716 = vst.msk [vmem:[#allocation2] sm:$0xff] %vm60, %v1714
    %1718 = vrot.lane.b32.xlu0 %v1705, 96
    %v1719 = vpop.permute.xlu0 %1718
    %1721 = vst.msk [vmem:[#allocation3] sm:$0xff] %vm60, %v1719
    %s1722 = scalar_lea.vmem %s7, 56
    %1723 = vst.msk [vmem:[%s1722] sm:$0xff] %vm60, %v1714
    // Predicated region
    $region34: #{seq_lstm_forward.1} parent=1 // pred_check
      _
    $region35: #{seq_lstm_forward.1} parent=1 // pred_check_branch
      %1725 = sbr.rel (0) target = $region37
    $region36: #{seq_lstm_forward.1} parent=1 // pred_region
      _
    $region37: #{seq_lstm_forward.1} parent=1 // pred_fallthru
      _
    // Predicated region
    $region38: #{seq_lstm_forward.1} parent=1 // pred_check
      _
    $region39: #{seq_lstm_forward.1} parent=1 // pred_check_branch
      %1727 = sbr.rel (0) target = $region41
    $region40: #{seq_lstm_forward.1} parent=1 // pred_region
      _
    $region41: #{seq_lstm_forward.1} parent=1 // pred_fallthru
      _
    %1728 = vsyncpa [#allocation6], 1

</llo_original>
